<compile_context>
chip_gen: v7x
topology: tpu7x:2x2x1
jax: 0.10.0
libtpu: 0.0.40
codegen_flags: <defaults>
</compile_context>

<pallas_src>
import functools

import jax
import jax.numpy as jnp
from jax.experimental import pallas as pl
from jax.experimental.pallas import tpu as pltpu


def _round_up(x, m):
    return (x + m - 1) // m * m


# ----------------------------- in-kernel helpers -----------------------------

def _layernorm(x, g, b, eps=1e-5):
    mu = jnp.mean(x, axis=-1, keepdims=True)
    xc = x - mu
    var = jnp.mean(xc * xc, axis=-1, keepdims=True)
    return xc * jax.lax.rsqrt(var + eps) * g + b


def _dot_bf16(x, w_bf16):
    # Weights live in VMEM as bf16 (halves the HBM->VMEM bytes); MXU accumulates in f32.
    return jnp.dot(x.astype(jnp.bfloat16), w_bf16, preferred_element_type=jnp.float32)


def _mlp_block(x, w, b, g, bt):
    # Linear -> ReLU -> LayerNorm  (MLPLayer fc with use_ReLU=True)
    return _layernorm(jnp.maximum(_dot_bf16(x, w) + b, 0.0), g, bt)


# ----------------------------- parameter packing ------------------------------

_W_BLOCKS = ("fc1", "fc2", "gru", "enc1", "enc2", "act")

# row index of each packed (1, 4H)-wide vector inside the f32 vector slab
_V_ROWS = {
    "fn_g": 0, "fn_b": 1,
    "fc1_b": 2, "fc1_g": 3, "fc1_bt": 4,
    "fc2_b": 5, "fc2_g": 6, "fc2_bt": 7,
    "gru_bias": 8,
    "rnn_g": 9, "rnn_b": 10,
    "enc_fn_g": 11, "enc_fn_b": 12,
    "enc1_b": 13, "enc1_g": 14, "enc1_bt": 15,
    "enc2_b": 16, "enc2_g": 17, "enc2_bt": 18,
    "act_b": 19,
}
_N_V_ROWS = _round_up(len(_V_ROWS), 8)


def _weight_layout(OBS, H):
    """Row offsets (multiples of 16 for bf16 sublane tiling) of each weight block
    inside the packed bf16 weight slab of width 4*H."""
    sizes = {"fc1": OBS, "fc2": H, "gru": 2 * H, "enc1": H, "enc2": H, "act": H}
    offs, row = {}, 0
    for name in _W_BLOCKS:
        offs[name] = row
        row += _round_up(sizes[name], 16)
    return offs, row


def pack_params(params, OBS, H, A, AP):
    """Pack one population member's parameters into (bf16 weight slab, f32 vector slab).
    Done ONCE per member, outside the per-step rollout loop."""
    WC = 4 * H
    assert WC >= OBS and WC >= AP, "obs_dim / padded action dim must fit the 4H slab width"
    offs, total_rows = _weight_layout(OBS, H)

    # Fused GRU weight (2H, 4H), gate columns [ r | z | i_n | h_n ]:
    #   rows 0:H   (x part): [ W_ir | W_iz | W_in | 0    ]
    #   rows H:2H  (h part): [ W_hr | W_hz | 0    | W_hn ]
    wih, whh = params["gru_wih"], params["gru_whh"]        # (H, 3H), gate cols [r|z|n]
    gru = jnp.zeros((2 * H, 4 * H), jnp.float32)
    gru = gru.at[:H, 0:2 * H].set(wih[:, 0:2 * H])
    gru = gru.at[:H, 2 * H:3 * H].set(wih[:, 2 * H:3 * H])
    gru = gru.at[H:, 0:2 * H].set(whh[:, 0:2 * H])
    gru = gru.at[H:, 3 * H:4 * H].set(whh[:, 2 * H:3 * H])
    act_w = jnp.zeros((H, AP), jnp.float32).at[:, :A].set(params["act_w"])

    mats = {"fc1": params["fc1_w"], "fc2": params["fc2_w"], "gru": gru,
            "enc1": params["enc1_w"], "enc2": params["enc2_w"], "act": act_w}
    wslab = jnp.zeros((total_rows, WC), jnp.float32)
    for name, m in mats.items():
        r0 = offs[name]
        wslab = wslab.at[r0:r0 + m.shape[0], 0:m.shape[1]].set(m)
    wslab = wslab.astype(jnp.bfloat16)

    # f32 vector slab: one row per bias / LayerNorm parameter, width 4H, zero padded.
    bih = params["gru_bih"].reshape(-1)
    bhh = params["gru_bhh"].reshape(-1)
    gru_bias = jnp.zeros((4 * H,), jnp.float32)
    gru_bias = gru_bias.at[0:2 * H].set(bih[0:2 * H] + bhh[0:2 * H])   # r,z biases fused
    gru_bias = gru_bias.at[2 * H:3 * H].set(bih[2 * H:3 * H])          # b_in
    gru_bias = gru_bias.at[3 * H:4 * H].set(bhh[2 * H:3 * H])          # b_hn
    act_b = jnp.zeros((AP,), jnp.float32).at[:A].set(params["act_b"].reshape(-1))

    vecs = dict(params)
    vecs["gru_bias"] = gru_bias
    vecs["act_b"] = act_b
    vslab = jnp.zeros((_N_V_ROWS, WC), jnp.float32)
    for name, row in _V_ROWS.items():
        v = vecs[name].reshape(-1)
        vslab = vslab.at[row, 0:v.shape[0]].set(v)
    return wslab, vslab


# --------------------------------- the kernel --------------------------------

def actor_kernel(obs_ref, h_ref, mask_ref, avail_ref, w_ref, v_ref,
                 scores_ref, hout_ref, *, OBS, H, AP, offs):
    def W(name, rows, cols):
        r0 = offs[name]
        return w_ref[r0:r0 + rows, 0:cols]

    def V(name, width):
        r = _V_ROWS[name]
        return v_ref[r:r + 1, 0:width]

    # ---------------- MLPBase: feature LayerNorm + 2 x (Linear/ReLU/LayerNorm) ----
    x = _layernorm(obs_ref[...], V("fn_g", OBS), V("fn_b", OBS))
    x = _mlp_block(x, W("fc1", OBS, H), V("fc1_b", H), V("fc1_g", H), V("fc1_bt", H))
    x = _mlp_block(x, W("fc2", H, H), V("fc2_b", H), V("fc2_g", H), V("fc2_bt", H))

    # ---------------- RNNLayer: single GRU step (one fused matmul) + LayerNorm ----
    h = h_ref[...] * mask_ref[...]                         # reset hidden where mask == 0
    xh = jnp.concatenate([x, h], axis=1)                   # (TB, 2H) lane-aligned concat
    g = _dot_bf16(xh, W("gru", 2 * H, 4 * H)) + V("gru_bias", 4 * H)   # (TB, 4H)
    r = jax.nn.sigmoid(g[:, 0:H])
    z = jax.nn.sigmoid(g[:, H:2 * H])
    n = jnp.tanh(g[:, 2 * H:3 * H] + r * g[:, 3 * H:4 * H])            # tanh(i_n + r * h_n)
    h_new = (1.0 - z) * n + z * h
    hout_ref[...] = h_new                                  # aliased onto the h input buffer
    x = _layernorm(h_new, V("rnn_g", H), V("rnn_b", H))

    # ---------------- Encoder (dp_array[act_inx]) ---------------------------------
    x = _layernorm(x, V("enc_fn_g", H), V("enc_fn_b", H))
    x = _mlp_block(x, W("enc1", H, H), V("enc1_b", H), V("enc1_g", H), V("enc1_bt", H))
    x = _mlp_block(x, W("enc2", H, H), V("enc2_b", H), V("enc2_g", H), V("enc2_bt", H))

    # ---------------- ACTLayer: Categorical, deterministic mode (argmax) ----------
    logits = _dot_bf16(x, W("act", H, AP)) + V("act_b", AP)
    logits = jnp.where(avail_ref[...] > 0.5, logits, -1e10)   # padded actions also masked
    max_l = jnp.max(logits, axis=-1, keepdims=True)
    lse = max_l + jnp.log(jnp.sum(jnp.exp(logits - max_l), axis=-1, keepdims=True))
    idx = jax.lax.broadcasted_iota(jnp.int32, logits.shape, 1)
    action = jnp.min(jnp.where(logits >= max_l, idx, AP), axis=-1, keepdims=True)  # first argmax
    logp = max_l - lse                                         # log_softmax at the argmax

    # Lane-dense (TB, 128) output slab: col 0 = action (as f32, exact for A < 2^24), col 1 = logp.
    col = jax.lax.broadcasted_iota(jnp.int32, scores_ref.shape, 1)
    scores_ref[...] = jnp.where(col == 0, action.astype(jnp.float32),
                                jnp.where(col == 1, logp, 0.0))


# --------------------------------- wrapper ------------------------------------

def make_forward(OBS, H, A, *, tb_max=256):
    """Build the jitted forward for fixed (obs_dim, hidden_size, num_actions)."""
    AP = _round_up(max(A, 1), 128)                  # lane-padded action width
    assert 4 * H >= OBS and 4 * H >= AP
    offs, w_rows = _weight_layout(OBS, H)
    kernel = functools.partial(actor_kernel, OBS=OBS, H=H, AP=AP, offs=offs)

    @jax.jit
    def forward(obs, rnn_states, masks, available_actions, wslab, vslab):
        B = obs.shape[0]
        TB = min(_round_up(B, 8), tb_max)           # batch tile (multiple of 8)
        B_pad = _round_up(B, TB)

        def pad_rows(x):
            return jnp.pad(x, ((0, B_pad - B), (0, 0)))

        obs_p = pad_rows(obs.astype(jnp.float32))
        h_p = pad_rows(rnn_states.reshape(B, H).astype(jnp.float32))
        mask_p = pad_rows(masks.astype(jnp.float32))
        avail_p = jnp.zeros((B_pad, AP), jnp.float32).at[:B, :A].set(
            available_actions.astype(jnp.float32))

        flops = 2 * B_pad * (OBS * H + H * H + (2 * H) * (4 * H) + 2 * H * H + H * AP)
        bytes_acc = int(obs_p.size * 4 + h_p.size * 4 + mask_p.size * 4 + avail_p.size * 4
                        + wslab.size * 2 + vslab.size * 4 + B_pad * (128 + H) * 4)
        cost = pl.CostEstimate(flops=flops,
                               transcendentals=B_pad * (3 * H + AP),
                               bytes_accessed=bytes_acc)

        scores, h_out = pl.pallas_call(
            kernel,
            out_shape=(jax.ShapeDtypeStruct((B_pad, 128), jnp.float32),   # [action | logp | pad]
                       jax.ShapeDtypeStruct((B_pad, H), jnp.float32)),    # new rnn hidden
            grid_spec=pltpu.PrefetchScalarGridSpec(
                num_scalar_prefetch=0,
                grid=(B_pad // TB,),
                in_specs=[
                    pl.BlockSpec((TB, OBS), lambda i: (i, 0)),
                    pl.BlockSpec((TB, H), lambda i: (i, 0)),
                    pl.BlockSpec((TB, 1), lambda i: (i, 0)),
                    pl.BlockSpec((TB, AP), lambda i: (i, 0)),
                    pl.BlockSpec((w_rows, 4 * H), lambda i: (0, 0)),      # weights VMEM-resident
                    pl.BlockSpec((_N_V_ROWS, 4 * H), lambda i: (0, 0)),   # vectors VMEM-resident
                ],
                out_specs=(
                    pl.BlockSpec((TB, 128), lambda i: (i, 0)),
                    pl.BlockSpec((TB, H), lambda i: (i, 0)),
                ),
            ),
            compiler_params=pltpu.CompilerParams(dimension_semantics=("parallel",)),
            input_output_aliases={1: 1},            # h_in HBM buffer reused for h_out
            cost_estimate=cost,
        )(obs_p, h_p, mask_p, avail_p, wslab, vslab)

        actions = scores[:B, 0:1].astype(jnp.int32)
        logp = scores[:B, 1:2]
        rnn_out = h_out[:B].reshape(B, 1, H)
        return actions, logp, rnn_out

    return forward


# ------------------------- pure-JAX reference (for check) ---------------------

def _ref_forward(obs, rnn_states, masks, avail, p):
    """Replicates the kernel math (bf16 matmul inputs, f32 accumulation / elementwise)."""
    H = p["fc1_w"].shape[1]

    def dot16(x, w):
        return jnp.dot(x.astype(jnp.bfloat16), w.astype(jnp.bfloat16),
                       preferred_element_type=jnp.float32)

    def block(x, w, b, g, bt):
        return _layernorm(jnp.maximum(dot16(x, w) + b, 0.0), g, bt)

    x = _layernorm(obs, p["fn_g"], p["fn_b"])
    x = block(x, p["fc1_w"], p["fc1_b"], p["fc1_g"], p["fc1_bt"])
    x = block(x, p["fc2_w"], p["fc2_b"], p["fc2_g"], p["fc2_bt"])
    h = rnn_states.reshape(obs.shape[0], H) * masks
    gi = dot16(x, p["gru_wih"]) + p["gru_bih"]
    gh = dot16(h, p["gru_whh"]) + p["gru_bhh"]
    r = jax.nn.sigmoid(gi[:, :H] + gh[:, :H])
    z = jax.nn.sigmoid(gi[:, H:2 * H] + gh[:, H:2 * H])
    n = jnp.tanh(gi[:, 2 * H:] + r * gh[:, 2 * H:])
    h_new = (1 - z) * n + z * h
    x = _layernorm(h_new, p["rnn_g"], p["rnn_b"])
    x = _layernorm(x, p["enc_fn_g"], p["enc_fn_b"])
    x = block(x, p["enc1_w"], p["enc1_b"], p["enc1_g"], p["enc1_bt"])
    x = block(x, p["enc2_w"], p["enc2_b"], p["enc2_g"], p["enc2_bt"])
    logits = dot16(x, p["act_w"]) + p["act_b"]
    logits = jnp.where(avail > 0.5, logits, -1e10)
    action = jnp.argmax(logits, axis=-1, keepdims=True).astype(jnp.int32)
    logp = jnp.max(jax.nn.log_softmax(logits, axis=-1), axis=-1, keepdims=True)
    return action, logp, h_new.reshape(obs.shape[0], 1, H)


# ----------------------------------- main --------------------------------------

if __name__ == "__main__":
    # batch, obs_dim, args.hidden_size, Discrete(A).  H=128 keeps gate/concat slices lane-aligned.
    B, OBS, H, A = 8, 24, 128, 5

    key = jax.random.PRNGKey(0)
    ks = iter(jax.random.split(key, 64))

    def rnd(shape, scale=0.1):
        return (jax.random.normal(next(ks), shape) * scale).astype(jnp.float32)

    params = {
        # MLPBase
        "fn_g": 1.0 + rnd((1, OBS)), "fn_b": rnd((1, OBS)),
        "fc1_w": rnd((OBS, H)), "fc1_b": rnd((1, H)), "fc1_g": 1.0 + rnd((1, H)), "fc1_bt": rnd((1, H)),
        "fc2_w": rnd((H, H)), "fc2_b": rnd((1, H)), "fc2_g": 1.0 + rnd((1, H)), "fc2_bt": rnd((1, H)),
        # GRU (weights stored transposed: (in, 3H) with gate columns [r | z | n])
        "gru_wih": rnd((H, 3 * H)), "gru_whh": rnd((H, 3 * H)),
        "gru_bih": rnd((1, 3 * H)), "gru_bhh": rnd((1, 3 * H)),
        "rnn_g": 1.0 + rnd((1, H)), "rnn_b": rnd((1, H)),
        # Encoder (dp_array[act_inx])
        "enc_fn_g": 1.0 + rnd((1, H)), "enc_fn_b": rnd((1, H)),
        "enc1_w": rnd((H, H)), "enc1_b": rnd((1, H)), "enc1_g": 1.0 + rnd((1, H)), "enc1_bt": rnd((1, H)),
        "enc2_w": rnd((H, H)), "enc2_b": rnd((1, H)), "enc2_g": 1.0 + rnd((1, H)), "enc2_bt": rnd((1, H)),
        # ACTLayer
        "act_w": rnd((H, A), scale=0.5), "act_b": rnd((1, A)),
    }

    obs = rnd((B, OBS), scale=1.0)
    rnn_states = rnd((B, 1, H), scale=1.0)                 # (batch, recurrent_N=1, hidden)
    masks = jnp.ones((B, 1), jnp.float32).at[0, 0].set(0.0)  # reset hidden of env 0
    available_actions = jnp.ones((B, A), jnp.float32).at[:, A - 1].set(0.0)

    AP = _round_up(A, 128)
    wslab, vslab = pack_params(params, OBS, H, A, AP)      # packed ONCE per population member
    forward = make_forward(OBS, H, A)

    actions, logp, h_out = forward(obs, rnn_states, masks, available_actions, wslab, vslab)
    jax.block_until_ready((actions, logp, h_out))

    # sanity check against pure-JAX reference
    ra, rl, rh = _ref_forward(obs, rnn_states, masks, available_actions, params)
    assert jnp.array_equal(actions, ra), f"action mismatch: {actions.ravel()} vs {ra.ravel()}"
    assert jnp.allclose(logp, rl, rtol=2e-3, atol=2e-3), "log-prob mismatch"
    assert jnp.allclose(h_out, rh, rtol=2e-3, atol=2e-3), "rnn state mismatch"

    print("KERNEL_OK")
</pallas_src>

<mosaic_0001>
module attributes {stable_mosaic.version = 11 : i64} {
  func.func @actor_kernel(%arg0: i32, %arg1: memref<8x24xf32, #tpu.memory_space<vmem>>, %arg2: memref<8x128xf32, #tpu.memory_space<vmem>>, %arg3: memref<8x1xf32, #tpu.memory_space<vmem>>, %arg4: memref<8x128xf32, #tpu.memory_space<vmem>>, %arg5: memref<800x512xbf16, #tpu.memory_space<vmem>>, %arg6: memref<24x512xf32, #tpu.memory_space<vmem>>, %arg7: memref<8x128xf32, #tpu.memory_space<vmem>>, %arg8: memref<8x128xf32, #tpu.memory_space<vmem>>) attributes {dimension_semantics = [#tpu.dimension_semantics<parallel>], iteration_bounds = array<i64: 1>, scalar_prefetch = 0 : i64, scratch_operands = 0 : i64, tpu.core_type = #tpu.core_type<tc>, window_params = [{transform_indices = @transform_0, window_bounds = array<i64: 8, 24>}, {transform_indices = @transform_1, window_bounds = array<i64: 8, 128>}, {transform_indices = @transform_2, window_bounds = array<i64: 8, 1>}, {transform_indices = @transform_3, window_bounds = array<i64: 8, 128>}, {pipeline_mode = #tpu.pipeline_mode<synchronous>, transform_indices = @transform_4, window_bounds = array<i64: 800, 512>}, {pipeline_mode = #tpu.pipeline_mode<synchronous>, transform_indices = @transform_5, window_bounds = array<i64: 24, 512>}, {transform_indices = @transform_6, window_bounds = array<i64: 8, 128>}, {transform_indices = @transform_7, window_bounds = array<i64: 8, 128>}]} {
    %c0 = arith.constant 0 : index
    %c0_0 = arith.constant 0 : index
    %0 = vector.load %arg1[%c0, %c0_0] : memref<8x24xf32, #tpu.memory_space<vmem>>, vector<8x24xf32>
    %c0_1 = arith.constant 0 : index
    %c0_2 = arith.constant 0 : index
    %1 = vector.load %arg6[%c0_1, %c0_2] : memref<24x512xf32, #tpu.memory_space<vmem>>, vector<1x24xf32>
    %c1 = arith.constant 1 : index
    %c0_3 = arith.constant 0 : index
    %2 = vector.load %arg6[%c1, %c0_3] : memref<24x512xf32, #tpu.memory_space<vmem>>, vector<1x24xf32>
    %cst = arith.constant dense<0.000000e+00> : vector<8xf32>
    %3 = vector.multi_reduction <add>, %0, %cst [1] : vector<8x24xf32> to vector<8xf32>
    %4 = vector.shape_cast %3 : vector<8xf32> to vector<8x1xf32>
    %cst_4 = arith.constant 2.400000e+01 : f32
    %5 = vector.broadcast %cst_4 : f32 to vector<8x1xf32>
    %6 = arith.divf %4, %5 : vector<8x1xf32>
    %7 = vector.broadcast %6 : vector<8x1xf32> to vector<8x24xf32>
    %8 = arith.subf %0, %7 : vector<8x24xf32>
    %9 = arith.mulf %8, %8 : vector<8x24xf32>
    %cst_5 = arith.constant dense<0.000000e+00> : vector<8xf32>
    %10 = vector.multi_reduction <add>, %9, %cst_5 [1] : vector<8x24xf32> to vector<8xf32>
    %11 = vector.shape_cast %10 : vector<8xf32> to vector<8x1xf32>
    %cst_6 = arith.constant 2.400000e+01 : f32
    %12 = vector.broadcast %cst_6 : f32 to vector<8x1xf32>
    %13 = arith.divf %11, %12 : vector<8x1xf32>
    %cst_7 = arith.constant 9.99999974E-6 : f32
    %14 = vector.broadcast %cst_7 : f32 to vector<8x1xf32>
    %15 = arith.addf %13, %14 : vector<8x1xf32>
    %16 = math.rsqrt %15 : vector<8x1xf32>
    %17 = vector.broadcast %16 : vector<8x1xf32> to vector<8x24xf32>
    %18 = arith.mulf %8, %17 : vector<8x24xf32>
    %19 = vector.broadcast %1 : vector<1x24xf32> to vector<8x24xf32>
    %20 = arith.mulf %18, %19 : vector<8x24xf32>
    %21 = vector.broadcast %2 : vector<1x24xf32> to vector<8x24xf32>
    %22 = arith.addf %20, %21 : vector<8x24xf32>
    %c0_8 = arith.constant 0 : index
    %c0_9 = arith.constant 0 : index
    %23 = vector.load %arg5[%c0_8, %c0_9] : memref<800x512xbf16, #tpu.memory_space<vmem>>, vector<24x128xbf16>
    %c2 = arith.constant 2 : index
    %c0_10 = arith.constant 0 : index
    %24 = vector.load %arg6[%c2, %c0_10] : memref<24x512xf32, #tpu.memory_space<vmem>>, vector<1x128xf32>
    %c3 = arith.constant 3 : index
    %c0_11 = arith.constant 0 : index
    %25 = vector.load %arg6[%c3, %c0_11] : memref<24x512xf32, #tpu.memory_space<vmem>>, vector<1x128xf32>
    %c4 = arith.constant 4 : index
    %c0_12 = arith.constant 0 : index
    %26 = vector.load %arg6[%c4, %c0_12] : memref<24x512xf32, #tpu.memory_space<vmem>>, vector<1x128xf32>
    %27 = arith.truncf %22 : vector<8x24xf32> to vector<8x24xbf16>
    %cst_13 = arith.constant dense<0.000000e+00> : vector<8x128xf32>
    %28 = tpu.matmul %27, %23, %cst_13 {dimension_numbers = #tpu.dot_dimension_numbers<[1], [0], [0], [1], [0, 0, 1, 1], [], []>} : vector<8x24xbf16>, vector<24x128xbf16>, vector<8x128xf32> -> vector<8x128xf32>
    %29 = vector.broadcast %24 : vector<1x128xf32> to vector<8x128xf32>
    %30 = arith.addf %28, %29 : vector<8x128xf32>
    %cst_14 = arith.constant 0.000000e+00 : f32
    %31 = vector.broadcast %cst_14 : f32 to vector<8x128xf32>
    %32 = arith.maximumf %30, %31 : vector<8x128xf32>
    %cst_15 = arith.constant dense<0.000000e+00> : vector<8xf32>
    %33 = vector.multi_reduction <add>, %32, %cst_15 [1] : vector<8x128xf32> to vector<8xf32>
    %34 = vector.shape_cast %33 : vector<8xf32> to vector<8x1xf32>
    %cst_16 = arith.constant 1.280000e+02 : f32
    %35 = vector.broadcast %cst_16 : f32 to vector<8x1xf32>
    %36 = arith.divf %34, %35 : vector<8x1xf32>
    %37 = vector.broadcast %36 : vector<8x1xf32> to vector<8x128xf32>
    %38 = arith.subf %32, %37 : vector<8x128xf32>
    %39 = arith.mulf %38, %38 : vector<8x128xf32>
    %cst_17 = arith.constant dense<0.000000e+00> : vector<8xf32>
    %40 = vector.multi_reduction <add>, %39, %cst_17 [1] : vector<8x128xf32> to vector<8xf32>
    %41 = vector.shape_cast %40 : vector<8xf32> to vector<8x1xf32>
    %cst_18 = arith.constant 1.280000e+02 : f32
    %42 = vector.broadcast %cst_18 : f32 to vector<8x1xf32>
    %43 = arith.divf %41, %42 : vector<8x1xf32>
    %cst_19 = arith.constant 9.99999974E-6 : f32
    %44 = vector.broadcast %cst_19 : f32 to vector<8x1xf32>
    %45 = arith.addf %43, %44 : vector<8x1xf32>
    %46 = math.rsqrt %45 : vector<8x1xf32>
    %47 = vector.broadcast %46 : vector<8x1xf32> to vector<8x128xf32>
    %48 = arith.mulf %38, %47 : vector<8x128xf32>
    %49 = vector.broadcast %25 : vector<1x128xf32> to vector<8x128xf32>
    %50 = arith.mulf %48, %49 : vector<8x128xf32>
    %51 = vector.broadcast %26 : vector<1x128xf32> to vector<8x128xf32>
    %52 = arith.addf %50, %51 : vector<8x128xf32>
    %c32 = arith.constant 32 : index
    %c0_20 = arith.constant 0 : index
    %53 = vector.load %arg5[%c32, %c0_20] : memref<800x512xbf16, #tpu.memory_space<vmem>>, vector<128x128xbf16>
    %c5 = arith.constant 5 : index
    %c0_21 = arith.constant 0 : index
    %54 = vector.load %arg6[%c5, %c0_21] : memref<24x512xf32, #tpu.memory_space<vmem>>, vector<1x128xf32>
    %c6 = arith.constant 6 : index
    %c0_22 = arith.constant 0 : index
    %55 = vector.load %arg6[%c6, %c0_22] : memref<24x512xf32, #tpu.memory_space<vmem>>, vector<1x128xf32>
    %c7 = arith.constant 7 : index
    %c0_23 = arith.constant 0 : index
    %56 = vector.load %arg6[%c7, %c0_23] : memref<24x512xf32, #tpu.memory_space<vmem>>, vector<1x128xf32>
    %57 = arith.truncf %52 : vector<8x128xf32> to vector<8x128xbf16>
    %cst_24 = arith.constant dense<0.000000e+00> : vector<8x128xf32>
    %58 = tpu.matmul %57, %53, %cst_24 {dimension_numbers = #tpu.dot_dimension_numbers<[1], [0], [0], [1], [0, 0, 1, 1], [], []>} : vector<8x128xbf16>, vector<128x128xbf16>, vector<8x128xf32> -> vector<8x128xf32>
    %59 = vector.broadcast %54 : vector<1x128xf32> to vector<8x128xf32>
    %60 = arith.addf %58, %59 : vector<8x128xf32>
    %cst_25 = arith.constant 0.000000e+00 : f32
    %61 = vector.broadcast %cst_25 : f32 to vector<8x128xf32>
    %62 = arith.maximumf %60, %61 : vector<8x128xf32>
    %cst_26 = arith.constant dense<0.000000e+00> : vector<8xf32>
    %63 = vector.multi_reduction <add>, %62, %cst_26 [1] : vector<8x128xf32> to vector<8xf32>
    %64 = vector.shape_cast %63 : vector<8xf32> to vector<8x1xf32>
    %cst_27 = arith.constant 1.280000e+02 : f32
    %65 = vector.broadcast %cst_27 : f32 to vector<8x1xf32>
    %66 = arith.divf %64, %65 : vector<8x1xf32>
    %67 = vector.broadcast %66 : vector<8x1xf32> to vector<8x128xf32>
    %68 = arith.subf %62, %67 : vector<8x128xf32>
    %69 = arith.mulf %68, %68 : vector<8x128xf32>
    %cst_28 = arith.constant dense<0.000000e+00> : vector<8xf32>
    %70 = vector.multi_reduction <add>, %69, %cst_28 [1] : vector<8x128xf32> to vector<8xf32>
    %71 = vector.shape_cast %70 : vector<8xf32> to vector<8x1xf32>
    %cst_29 = arith.constant 1.280000e+02 : f32
    %72 = vector.broadcast %cst_29 : f32 to vector<8x1xf32>
    %73 = arith.divf %71, %72 : vector<8x1xf32>
    %cst_30 = arith.constant 9.99999974E-6 : f32
    %74 = vector.broadcast %cst_30 : f32 to vector<8x1xf32>
    %75 = arith.addf %73, %74 : vector<8x1xf32>
    %76 = math.rsqrt %75 : vector<8x1xf32>
    %77 = vector.broadcast %76 : vector<8x1xf32> to vector<8x128xf32>
    %78 = arith.mulf %68, %77 : vector<8x128xf32>
    %79 = vector.broadcast %55 : vector<1x128xf32> to vector<8x128xf32>
    %80 = arith.mulf %78, %79 : vector<8x128xf32>
    %81 = vector.broadcast %56 : vector<1x128xf32> to vector<8x128xf32>
    %82 = arith.addf %80, %81 : vector<8x128xf32>
    %c0_31 = arith.constant 0 : index
    %c0_32 = arith.constant 0 : index
    %83 = vector.load %arg2[%c0_31, %c0_32] : memref<8x128xf32, #tpu.memory_space<vmem>>, vector<8x128xf32>
    %c0_33 = arith.constant 0 : index
    %c0_34 = arith.constant 0 : index
    %84 = vector.load %arg3[%c0_33, %c0_34] : memref<8x1xf32, #tpu.memory_space<vmem>>, vector<8x1xf32>
    %85 = vector.broadcast %84 : vector<8x1xf32> to vector<8x128xf32>
    %86 = arith.mulf %83, %85 : vector<8x128xf32>
    %87 = tpu.concatenate %82, %86 in 1 : vector<8x128xf32>, vector<8x128xf32> -> vector<8x256xf32>
    %c160 = arith.constant 160 : index
    %c0_35 = arith.constant 0 : index
    %88 = vector.load %arg5[%c160, %c0_35] : memref<800x512xbf16, #tpu.memory_space<vmem>>, vector<256x512xbf16>
    %89 = arith.truncf %87 : vector<8x256xf32> to vector<8x256xbf16>
    %cst_36 = arith.constant dense<0.000000e+00> : vector<8x512xf32>
    %90 = tpu.matmul %89, %88, %cst_36 {dimension_numbers = #tpu.dot_dimension_numbers<[1], [0], [0], [1], [0, 0, 1, 1], [], []>} : vector<8x256xbf16>, vector<256x512xbf16>, vector<8x512xf32> -> vector<8x512xf32>
    %c8 = arith.constant 8 : index
    %c0_37 = arith.constant 0 : index
    %91 = vector.load %arg6[%c8, %c0_37] : memref<24x512xf32, #tpu.memory_space<vmem>>, vector<1x512xf32>
    %92 = vector.broadcast %91 : vector<1x512xf32> to vector<8x512xf32>
    %93 = arith.addf %90, %92 : vector<8x512xf32>
    %94 = vector.extract_strided_slice %93 {offsets = [0, 0], sizes = [8, 128], strides = [1, 1]} : vector<8x512xf32> to vector<8x128xf32>
    %95 = arith.negf %94 : vector<8x128xf32>
    %96 = math.exp %95 : vector<8x128xf32>
    %cst_38 = arith.constant 1.000000e+00 : f32
    %97 = vector.broadcast %cst_38 : f32 to vector<8x128xf32>
    %98 = arith.addf %97, %96 : vector<8x128xf32>
    %99 = arith.divf %97, %98 : vector<8x128xf32>
    %100 = vector.extract_strided_slice %93 {offsets = [0, 128], sizes = [8, 128], strides = [1, 1]} : vector<8x512xf32> to vector<8x128xf32>
    %101 = arith.negf %100 : vector<8x128xf32>
    %102 = math.exp %101 : vector<8x128xf32>
    %cst_39 = arith.constant 1.000000e+00 : f32
    %103 = vector.broadcast %cst_39 : f32 to vector<8x128xf32>
    %104 = arith.addf %103, %102 : vector<8x128xf32>
    %105 = arith.divf %103, %104 : vector<8x128xf32>
    %106 = vector.extract_strided_slice %93 {offsets = [0, 256], sizes = [8, 128], strides = [1, 1]} : vector<8x512xf32> to vector<8x128xf32>
    %107 = vector.extract_strided_slice %93 {offsets = [0, 384], sizes = [8, 128], strides = [1, 1]} : vector<8x512xf32> to vector<8x128xf32>
    %108 = arith.mulf %99, %107 : vector<8x128xf32>
    %109 = arith.addf %106, %108 : vector<8x128xf32>
    %110 = math.tanh %109 : vector<8x128xf32>
    %cst_40 = arith.constant 1.000000e+00 : f32
    %111 = vector.broadcast %cst_40 : f32 to vector<8x128xf32>
    %112 = arith.subf %111, %105 : vector<8x128xf32>
    %113 = arith.mulf %112, %110 : vector<8x128xf32>
    %114 = arith.mulf %105, %86 : vector<8x128xf32>
    %115 = arith.addf %113, %114 : vector<8x128xf32>
    %c0_41 = arith.constant 0 : index
    %c0_42 = arith.constant 0 : index
    %116 = vector.load %arg8[%c0_41, %c0_42] : memref<8x128xf32, #tpu.memory_space<vmem>>, vector<8x128xf32>
    tpu.vector_store %arg8[%c0_41, %c0_42], %115 {strides = array<i32>} : memref<8x128xf32, #tpu.memory_space<vmem>>, vector<8x128xf32>,
    %c9 = arith.constant 9 : index
    %c0_43 = arith.constant 0 : index
    %117 = vector.load %arg6[%c9, %c0_43] : memref<24x512xf32, #tpu.memory_space<vmem>>, vector<1x128xf32>
    %c10 = arith.constant 10 : index
    %c0_44 = arith.constant 0 : index
    %118 = vector.load %arg6[%c10, %c0_44] : memref<24x512xf32, #tpu.memory_space<vmem>>, vector<1x128xf32>
    %cst_45 = arith.constant dense<0.000000e+00> : vector<8xf32>
    %119 = vector.multi_reduction <add>, %115, %cst_45 [1] : vector<8x128xf32> to vector<8xf32>
    %120 = vector.shape_cast %119 : vector<8xf32> to vector<8x1xf32>
    %cst_46 = arith.constant 1.280000e+02 : f32
    %121 = vector.broadcast %cst_46 : f32 to vector<8x1xf32>
    %122 = arith.divf %120, %121 : vector<8x1xf32>
    %123 = vector.broadcast %122 : vector<8x1xf32> to vector<8x128xf32>
    %124 = arith.subf %115, %123 : vector<8x128xf32>
    %125 = arith.mulf %124, %124 : vector<8x128xf32>
    %cst_47 = arith.constant dense<0.000000e+00> : vector<8xf32>
    %126 = vector.multi_reduction <add>, %125, %cst_47 [1] : vector<8x128xf32> to vector<8xf32>
    %127 = vector.shape_cast %126 : vector<8xf32> to vector<8x1xf32>
    %cst_48 = arith.constant 1.280000e+02 : f32
    %128 = vector.broadcast %cst_48 : f32 to vector<8x1xf32>
    %129 = arith.divf %127, %128 : vector<8x1xf32>
    %cst_49 = arith.constant 9.99999974E-6 : f32
    %130 = vector.broadcast %cst_49 : f32 to vector<8x1xf32>
    %131 = arith.addf %129, %130 : vector<8x1xf32>
    %132 = math.rsqrt %131 : vector<8x1xf32>
    %133 = vector.broadcast %132 : vector<8x1xf32> to vector<8x128xf32>
    %134 = arith.mulf %124, %133 : vector<8x128xf32>
    %135 = vector.broadcast %117 : vector<1x128xf32> to vector<8x128xf32>
    %136 = arith.mulf %134, %135 : vector<8x128xf32>
    %137 = vector.broadcast %118 : vector<1x128xf32> to vector<8x128xf32>
    %138 = arith.addf %136, %137 : vector<8x128xf32>
    %c11 = arith.constant 11 : index
    %c0_50 = arith.constant 0 : index
    %139 = vector.load %arg6[%c11, %c0_50] : memref<24x512xf32, #tpu.memory_space<vmem>>, vector<1x128xf32>
    %c12 = arith.constant 12 : index
    %c0_51 = arith.constant 0 : index
    %140 = vector.load %arg6[%c12, %c0_51] : memref<24x512xf32, #tpu.memory_space<vmem>>, vector<1x128xf32>
    %cst_52 = arith.constant dense<0.000000e+00> : vector<8xf32>
    %141 = vector.multi_reduction <add>, %138, %cst_52 [1] : vector<8x128xf32> to vector<8xf32>
    %142 = vector.shape_cast %141 : vector<8xf32> to vector<8x1xf32>
    %cst_53 = arith.constant 1.280000e+02 : f32
    %143 = vector.broadcast %cst_53 : f32 to vector<8x1xf32>
    %144 = arith.divf %142, %143 : vector<8x1xf32>
    %145 = vector.broadcast %144 : vector<8x1xf32> to vector<8x128xf32>
    %146 = arith.subf %138, %145 : vector<8x128xf32>
    %147 = arith.mulf %146, %146 : vector<8x128xf32>
    %cst_54 = arith.constant dense<0.000000e+00> : vector<8xf32>
    %148 = vector.multi_reduction <add>, %147, %cst_54 [1] : vector<8x128xf32> to vector<8xf32>
    %149 = vector.shape_cast %148 : vector<8xf32> to vector<8x1xf32>
    %cst_55 = arith.constant 1.280000e+02 : f32
    %150 = vector.broadcast %cst_55 : f32 to vector<8x1xf32>
    %151 = arith.divf %149, %150 : vector<8x1xf32>
    %cst_56 = arith.constant 9.99999974E-6 : f32
    %152 = vector.broadcast %cst_56 : f32 to vector<8x1xf32>
    %153 = arith.addf %151, %152 : vector<8x1xf32>
    %154 = math.rsqrt %153 : vector<8x1xf32>
    %155 = vector.broadcast %154 : vector<8x1xf32> to vector<8x128xf32>
    %156 = arith.mulf %146, %155 : vector<8x128xf32>
    %157 = vector.broadcast %139 : vector<1x128xf32> to vector<8x128xf32>
    %158 = arith.mulf %156, %157 : vector<8x128xf32>
    %159 = vector.broadcast %140 : vector<1x128xf32> to vector<8x128xf32>
    %160 = arith.addf %158, %159 : vector<8x128xf32>
    %c416 = arith.constant 416 : index
    %c0_57 = arith.constant 0 : index
    %161 = vector.load %arg5[%c416, %c0_57] : memref<800x512xbf16, #tpu.memory_space<vmem>>, vector<128x128xbf16>
    %c13 = arith.constant 13 : index
    %c0_58 = arith.constant 0 : index
    %162 = vector.load %arg6[%c13, %c0_58] : memref<24x512xf32, #tpu.memory_space<vmem>>, vector<1x128xf32>
    %c14 = arith.constant 14 : index
    %c0_59 = arith.constant 0 : index
    %163 = vector.load %arg6[%c14, %c0_59] : memref<24x512xf32, #tpu.memory_space<vmem>>, vector<1x128xf32>
    %c15 = arith.constant 15 : index
    %c0_60 = arith.constant 0 : index
    %164 = vector.load %arg6[%c15, %c0_60] : memref<24x512xf32, #tpu.memory_space<vmem>>, vector<1x128xf32>
    %165 = arith.truncf %160 : vector<8x128xf32> to vector<8x128xbf16>
    %cst_61 = arith.constant dense<0.000000e+00> : vector<8x128xf32>
    %166 = tpu.matmul %165, %161, %cst_61 {dimension_numbers = #tpu.dot_dimension_numbers<[1], [0], [0], [1], [0, 0, 1, 1], [], []>} : vector<8x128xbf16>, vector<128x128xbf16>, vector<8x128xf32> -> vector<8x128xf32>
    %167 = vector.broadcast %162 : vector<1x128xf32> to vector<8x128xf32>
    %168 = arith.addf %166, %167 : vector<8x128xf32>
    %cst_62 = arith.constant 0.000000e+00 : f32
    %169 = vector.broadcast %cst_62 : f32 to vector<8x128xf32>
    %170 = arith.maximumf %168, %169 : vector<8x128xf32>
    %cst_63 = arith.constant dense<0.000000e+00> : vector<8xf32>
    %171 = vector.multi_reduction <add>, %170, %cst_63 [1] : vector<8x128xf32> to vector<8xf32>
    %172 = vector.shape_cast %171 : vector<8xf32> to vector<8x1xf32>
    %cst_64 = arith.constant 1.280000e+02 : f32
    %173 = vector.broadcast %cst_64 : f32 to vector<8x1xf32>
    %174 = arith.divf %172, %173 : vector<8x1xf32>
    %175 = vector.broadcast %174 : vector<8x1xf32> to vector<8x128xf32>
    %176 = arith.subf %170, %175 : vector<8x128xf32>
    %177 = arith.mulf %176, %176 : vector<8x128xf32>
    %cst_65 = arith.constant dense<0.000000e+00> : vector<8xf32>
    %178 = vector.multi_reduction <add>, %177, %cst_65 [1] : vector<8x128xf32> to vector<8xf32>
    %179 = vector.shape_cast %178 : vector<8xf32> to vector<8x1xf32>
    %cst_66 = arith.constant 1.280000e+02 : f32
    %180 = vector.broadcast %cst_66 : f32 to vector<8x1xf32>
    %181 = arith.divf %179, %180 : vector<8x1xf32>
    %cst_67 = arith.constant 9.99999974E-6 : f32
    %182 = vector.broadcast %cst_67 : f32 to vector<8x1xf32>
    %183 = arith.addf %181, %182 : vector<8x1xf32>
    %184 = math.rsqrt %183 : vector<8x1xf32>
    %185 = vector.broadcast %184 : vector<8x1xf32> to vector<8x128xf32>
    %186 = arith.mulf %176, %185 : vector<8x128xf32>
    %187 = vector.broadcast %163 : vector<1x128xf32> to vector<8x128xf32>
    %188 = arith.mulf %186, %187 : vector<8x128xf32>
    %189 = vector.broadcast %164 : vector<1x128xf32> to vector<8x128xf32>
    %190 = arith.addf %188, %189 : vector<8x128xf32>
    %c544 = arith.constant 544 : index
    %c0_68 = arith.constant 0 : index
    %191 = vector.load %arg5[%c544, %c0_68] : memref<800x512xbf16, #tpu.memory_space<vmem>>, vector<128x128xbf16>
    %c16 = arith.constant 16 : index
    %c0_69 = arith.constant 0 : index
    %192 = vector.load %arg6[%c16, %c0_69] : memref<24x512xf32, #tpu.memory_space<vmem>>, vector<1x128xf32>
    %c17 = arith.constant 17 : index
    %c0_70 = arith.constant 0 : index
    %193 = vector.load %arg6[%c17, %c0_70] : memref<24x512xf32, #tpu.memory_space<vmem>>, vector<1x128xf32>
    %c18 = arith.constant 18 : index
    %c0_71 = arith.constant 0 : index
    %194 = vector.load %arg6[%c18, %c0_71] : memref<24x512xf32, #tpu.memory_space<vmem>>, vector<1x128xf32>
    %195 = arith.truncf %190 : vector<8x128xf32> to vector<8x128xbf16>
    %cst_72 = arith.constant dense<0.000000e+00> : vector<8x128xf32>
    %196 = tpu.matmul %195, %191, %cst_72 {dimension_numbers = #tpu.dot_dimension_numbers<[1], [0], [0], [1], [0, 0, 1, 1], [], []>} : vector<8x128xbf16>, vector<128x128xbf16>, vector<8x128xf32> -> vector<8x128xf32>
    %197 = vector.broadcast %192 : vector<1x128xf32> to vector<8x128xf32>
    %198 = arith.addf %196, %197 : vector<8x128xf32>
    %cst_73 = arith.constant 0.000000e+00 : f32
    %199 = vector.broadcast %cst_73 : f32 to vector<8x128xf32>
    %200 = arith.maximumf %198, %199 : vector<8x128xf32>
    %cst_74 = arith.constant dense<0.000000e+00> : vector<8xf32>
    %201 = vector.multi_reduction <add>, %200, %cst_74 [1] : vector<8x128xf32> to vector<8xf32>
    %202 = vector.shape_cast %201 : vector<8xf32> to vector<8x1xf32>
    %cst_75 = arith.constant 1.280000e+02 : f32
    %203 = vector.broadcast %cst_75 : f32 to vector<8x1xf32>
    %204 = arith.divf %202, %203 : vector<8x1xf32>
    %205 = vector.broadcast %204 : vector<8x1xf32> to vector<8x128xf32>
    %206 = arith.subf %200, %205 : vector<8x128xf32>
    %207 = arith.mulf %206, %206 : vector<8x128xf32>
    %cst_76 = arith.constant dense<0.000000e+00> : vector<8xf32>
    %208 = vector.multi_reduction <add>, %207, %cst_76 [1] : vector<8x128xf32> to vector<8xf32>
    %209 = vector.shape_cast %208 : vector<8xf32> to vector<8x1xf32>
    %cst_77 = arith.constant 1.280000e+02 : f32
    %210 = vector.broadcast %cst_77 : f32 to vector<8x1xf32>
    %211 = arith.divf %209, %210 : vector<8x1xf32>
    %cst_78 = arith.constant 9.99999974E-6 : f32
    %212 = vector.broadcast %cst_78 : f32 to vector<8x1xf32>
    %213 = arith.addf %211, %212 : vector<8x1xf32>
    %214 = math.rsqrt %213 : vector<8x1xf32>
    %215 = vector.broadcast %214 : vector<8x1xf32> to vector<8x128xf32>
    %216 = arith.mulf %206, %215 : vector<8x128xf32>
    %217 = vector.broadcast %193 : vector<1x128xf32> to vector<8x128xf32>
    %218 = arith.mulf %216, %217 : vector<8x128xf32>
    %219 = vector.broadcast %194 : vector<1x128xf32> to vector<8x128xf32>
    %220 = arith.addf %218, %219 : vector<8x128xf32>
    %c672 = arith.constant 672 : index
    %c0_79 = arith.constant 0 : index
    %221 = vector.load %arg5[%c672, %c0_79] : memref<800x512xbf16, #tpu.memory_space<vmem>>, vector<128x128xbf16>
    %222 = arith.truncf %220 : vector<8x128xf32> to vector<8x128xbf16>
    %cst_80 = arith.constant dense<0.000000e+00> : vector<8x128xf32>
    %223 = tpu.matmul %222, %221, %cst_80 {dimension_numbers = #tpu.dot_dimension_numbers<[1], [0], [0], [1], [0, 0, 1, 1], [], []>} : vector<8x128xbf16>, vector<128x128xbf16>, vector<8x128xf32> -> vector<8x128xf32>
    %c19 = arith.constant 19 : index
    %c0_81 = arith.constant 0 : index
    %224 = vector.load %arg6[%c19, %c0_81] : memref<24x512xf32, #tpu.memory_space<vmem>>, vector<1x128xf32>
    %225 = vector.broadcast %224 : vector<1x128xf32> to vector<8x128xf32>
    %226 = arith.addf %223, %225 : vector<8x128xf32>
    %c0_82 = arith.constant 0 : index
    %c0_83 = arith.constant 0 : index
    %227 = vector.load %arg4[%c0_82, %c0_83] : memref<8x128xf32, #tpu.memory_space<vmem>>, vector<8x128xf32>
    %cst_84 = arith.constant 5.000000e-01 : f32
    %228 = vector.broadcast %cst_84 : f32 to vector<8x128xf32>
    %229 = arith.cmpf ogt, %227, %228 : vector<8x128xf32>
    %cst_85 = arith.constant -1.000000e+10 : f32
    %230 = vector.broadcast %cst_85 : f32 to vector<8x128xf32>
    %231 = arith.select %229, %226, %230 : vector<8x128xi1>, vector<8x128xf32>
    %cst_86 = arith.constant dense<0xFF800000> : vector<8xf32>
    %232 = vector.multi_reduction <maximumf>, %231, %cst_86 [1] : vector<8x128xf32> to vector<8xf32>
    %233 = vector.shape_cast %232 : vector<8xf32> to vector<8x1xf32>
    %234 = vector.broadcast %233 : vector<8x1xf32> to vector<8x128xf32>
    %235 = arith.subf %231, %234 : vector<8x128xf32>
    %236 = math.exp %235 : vector<8x128xf32>
    %cst_87 = arith.constant dense<0.000000e+00> : vector<8xf32>
    %237 = vector.multi_reduction <add>, %236, %cst_87 [1] : vector<8x128xf32> to vector<8xf32>
    %238 = vector.shape_cast %237 : vector<8xf32> to vector<8x1xf32>
    %239 = math.log %238 : vector<8x1xf32>
    %240 = arith.addf %233, %239 : vector<8x1xf32>
    %241 = tpu.iota {dimensions = array<i32: 1>} : vector<8x128xi32>
    %242 = vector.broadcast %233 : vector<8x1xf32> to vector<8x128xf32>
    %243 = arith.cmpf oge, %231, %242 : vector<8x128xf32>
    %c128_i32 = arith.constant 128 : i32
    %244 = vector.broadcast %c128_i32 : i32 to vector<8x128xi32>
    %245 = arith.select %243, %241, %244 : vector<8x128xi1>, vector<8x128xi32>
    %cst_88 = arith.constant dense<2147483647> : vector<8xi32>
    %246 = vector.multi_reduction <minsi>, %245, %cst_88 [1] : vector<8x128xi32> to vector<8xi32>
    %247 = vector.shape_cast %246 : vector<8xi32> to vector<8x1xi32>
    %248 = arith.subf %233, %240 : vector<8x1xf32>
    %249 = tpu.iota {dimensions = array<i32: 1>} : vector<8x128xi32>
    %c0_i32 = arith.constant 0 : i32
    %250 = vector.broadcast %c0_i32 : i32 to vector<8x128xi32>
    %251 = arith.cmpi eq, %249, %250 : vector<8x128xi32>
    %252 = arith.sitofp %247 : vector<8x1xi32> to vector<8x1xf32>
    %c1_i32 = arith.constant 1 : i32
    %253 = vector.broadcast %c1_i32 : i32 to vector<8x128xi32>
    %254 = arith.cmpi eq, %249, %253 : vector<8x128xi32>
    %cst_89 = arith.constant 0.000000e+00 : f32
    %255 = vector.shape_cast %248 : vector<8x1xf32> to vector<8x1xf32>
    %256 = vector.broadcast %255 : vector<8x1xf32> to vector<8x128xf32>
    %257 = vector.broadcast %cst_89 : f32 to vector<8x128xf32>
    %258 = arith.select %254, %256, %257 : vector<8x128xi1>, vector<8x128xf32>
    %259 = vector.shape_cast %252 : vector<8x1xf32> to vector<8x1xf32>
    %260 = vector.broadcast %259 : vector<8x1xf32> to vector<8x128xf32>
    %261 = arith.select %251, %260, %258 : vector<8x128xi1>, vector<8x128xf32>
    %c0_90 = arith.constant 0 : index
    %c0_91 = arith.constant 0 : index
    %262 = vector.load %arg7[%c0_90, %c0_91] : memref<8x128xf32, #tpu.memory_space<vmem>>, vector<8x128xf32>
    tpu.vector_store %arg7[%c0_90, %c0_91], %261 {strides = array<i32>} : memref<8x128xf32, #tpu.memory_space<vmem>>, vector<8x128xf32>,
    return
  }
  func.func @transform_0(%arg0: i32) -> (i32, i32) {
    %c0_i32 = arith.constant 0 : i32
    %c0_i32_0 = arith.constant 0 : i32
    return %arg0, %c0_i32 : i32, i32
  }
  func.func @transform_1(%arg0: i32) -> (i32, i32) {
    %c0_i32 = arith.constant 0 : i32
    %c0_i32_0 = arith.constant 0 : i32
    return %arg0, %c0_i32 : i32, i32
  }
  func.func @transform_2(%arg0: i32) -> (i32, i32) {
    %c0_i32 = arith.constant 0 : i32
    %c0_i32_0 = arith.constant 0 : i32
    return %arg0, %c0_i32 : i32, i32
  }
  func.func @transform_3(%arg0: i32) -> (i32, i32) {
    %c0_i32 = arith.constant 0 : i32
    %c0_i32_0 = arith.constant 0 : i32
    return %arg0, %c0_i32 : i32, i32
  }
  func.func @transform_4(%arg0: i32) -> (i32, i32) {
    %c0_i32 = arith.constant 0 : i32
    %c0_i32_0 = arith.constant 0 : i32
    %c0_i32_1 = arith.constant 0 : i32
    return %c0_i32, %c0_i32_0 : i32, i32
  }
  func.func @transform_5(%arg0: i32) -> (i32, i32) {
    %c0_i32 = arith.constant 0 : i32
    %c0_i32_0 = arith.constant 0 : i32
    %c0_i32_1 = arith.constant 0 : i32
    return %c0_i32, %c0_i32_0 : i32, i32
  }
  func.func @transform_6(%arg0: i32) -> (i32, i32) {
    %c0_i32 = arith.constant 0 : i32
    %c0_i32_0 = arith.constant 0 : i32
    return %arg0, %c0_i32 : i32, i32
  }
  func.func @transform_7(%arg0: i32) -> (i32, i32) {
    %c0_i32 = arith.constant 0 : i32
    %c0_i32_0 = arith.constant 0 : i32
    return %arg0, %c0_i32 : i32, i32
  }
}

</mosaic_0001>

<llo_original>
// kernel: forward.1
$region0: #{forward.1}
  #allocation0 [shape = 'u32[]', space=smem, size = 0x4, offset = 0x4, fixed_abs, tag = 'smem constant byte address 0x4 - core index']
  #allocation1 [shape = 'u32[144,128]{1,0:T(1,128)}', space=vmem, size = 0x12000, scoped, tag = 'internal scratch']
  %s0 = inlined_call_operand.vmem [shape: f32[8,24], index: 0, kind: input, shape index: {}]
  %s1 = inlined_call_operand.vmem [shape: f32[8,128], index: 1, kind: input, shape index: {}, may-alias: {1,7}]
  %s2 = inlined_call_operand.vmem [shape: f32[8,1], index: 2, kind: input, shape index: {}]
  %s3 = inlined_call_operand.vmem [shape: f32[8,128], index: 3, kind: input, shape index: {}]
  %s4 = inlined_call_operand.hbm [shape: bf16[800,512], index: 4, kind: input, shape index: {}]
  %s5 = inlined_call_operand.hbm [shape: f32[24,512], index: 5, kind: input, shape index: {}]
  %s6 = inlined_call_operand.vmem [shape: f32[8,128], index: 6, kind: output, shape index: {0}]
  %s7 = inlined_call_operand.vmem [shape: f32[8,128], index: 7, kind: output, shape index: {1}, may-alias: {1,7}]
  %8 = xla_tuple %s6, %s7
  %s9 = sld [smem:[#allocation0]]
  $region50: #{forward.1} parent=0
    _
  %s11 = ssub.s32 1, %s9
  %s12 = scalar_select 0, %s11, %s9
  $region1: #{forward.1} parent=0
    #allocation2 [shape = 'u8[819200]{0}', space=vmem, size = 0xc8000, scoped, tag = 'input window, operand 4, single buffered']
    #allocation3 [shape = 's32[1]{0}', space=sflag, size = 0x4, scoped, tag = 'scoped memory for forward.1']
    #allocation4 [shape = 'u8[49152]{0}', space=vmem, size = 0xc000, scoped, tag = 'input window, operand 5, single buffered']
    #allocation5 [shape = 's32[1]{0}', space=sflag, size = 0x4, scoped, tag = 'scoped memory for forward.1']
    %13 = vsyncpa [#allocation3], 0
    %14 = vsyncpa [#allocation5], 0
    // Predicated region
    $region2: #{forward.1} parent=1 // pred_check
      _
    $region3: #{forward.1} parent=1 // pred_check_branch
      %16 = sbr.rel (0) target = $region5
    $region4: #{forward.1} parent=1 // pred_region
      _
    $region5: #{forward.1} parent=1 // pred_fallthru
      _
    // Predicated region
    $region6: #{forward.1} parent=1 // pred_check
      _
    $region7: #{forward.1} parent=1 // pred_check_branch
      %18 = sbr.rel (0) target = $region9
    $region8: #{forward.1} parent=1 // pred_region
      _
    $region9: #{forward.1} parent=1 // pred_fallthru
      _
    // Predicated region
    $region10: #{forward.1} parent=1 // pred_check
      _
    $region11: #{forward.1} parent=1 // pred_check_branch
      %20 = sbr.rel (0) target = $region13
    $region12: #{forward.1} parent=1 // pred_region
      _
    $region13: #{forward.1} parent=1 // pred_fallthru
      _
    // Predicated region
    $region14: #{forward.1} parent=1 // pred_check
      _
    $region15: #{forward.1} parent=1 // pred_check_branch
      %22 = sbr.rel (0) target = $region17
    $region16: #{forward.1} parent=1 // pred_region
      _
    $region17: #{forward.1} parent=1 // pred_fallthru
      _
    // Predicated region
    $region18: #{forward.1} parent=1 // pred_check
      _
    $region19: #{forward.1} parent=1 // pred_check_branch
      %24 = sbr.rel (0) target = $region21
    $region20: #{forward.1} parent=1 // pred_region
      %s26 = ssub.s32 25600, 25600
      %27 = vsyncadd [#allocation3], %s26
      %s28 = sshll.u32 [#allocation2], 4
      %s29 = int_to_ptr.vmem [resolvable:$true] %s28
      %34 = dma.hbm_to_vmem [thread:$0]  %s4, 25600, %s29, [#allocation3], 256, 256, 16
    $region21: #{forward.1} parent=1 // pred_fallthru
      _
    // Predicated region
    $region22: #{forward.1} parent=1 // pred_check
      _
    $region23: #{forward.1} parent=1 // pred_check_branch
      %36 = sbr.rel (0) target = $region25
    $region24: #{forward.1} parent=1 // pred_region
      %s38 = ssub.s32 1536, 1536
      %39 = vsyncadd [#allocation5], %s38
      %s40 = sshll.u32 [#allocation4], 4
      %s41 = int_to_ptr.vmem [resolvable:$true] %s40
      %46 = dma.hbm_to_vmem [thread:$0]  %s5, 1536, %s41, [#allocation5], 512, 512, 32
    $region25: #{forward.1} parent=1 // pred_fallthru
      _
    // Predicated region
    $region26: #{forward.1} parent=1 // pred_check
      _
    $region27: #{forward.1} parent=1 // pred_check_branch
      %48 = sbr.rel (0) target = $region29
    $region28: #{forward.1} parent=1 // pred_region
      %49 = dma.done [#allocation3], 25600
    $region29: #{forward.1} parent=1 // pred_fallthru
      _
    // Predicated region
    $region30: #{forward.1} parent=1 // pred_check
      _
    $region31: #{forward.1} parent=1 // pred_check_branch
      %51 = sbr.rel (0) target = $region33
    $region32: #{forward.1} parent=1 // pred_region
      %52 = dma.done [#allocation5], 1536
    $region33: #{forward.1} parent=1 // pred_fallthru
      _
    %v54 = vld [vmem:[%s0] sm:$0xff]
    %v55 = vld [vmem:[#allocation4] ss:$0 sm:$0xff]
    %v56 = vld [vmem:[#allocation4 + $0x1] ss:$0 sm:$0xff]
    %vm57 = vcmask 195584
    %v58 = vsel %vm57, %v54, 0.0
    %59 = vadd.xlane.f32.xlu0 %v58
    %v60 = vpop.xlane.xlu0 %59
    %v61 = vrcp.pop 24.0
    %v62 = vmul.f32 %v60, %v61
    %v63 = vsub.f32 %v54, %v62
    %v64 = vmul.f32 %v63, %v63
    %v65 = vsel %vm57, %v64, 0.0
    %66 = vadd.xlane.f32.xlu0 %v65
    %v67 = vpop.xlane.xlu0 %66
    %v68 = vmul.f32 %v67, %v61
    %v69 = vadd.f32 %v68, 1e-05
    %v70 = vrsqrt.pop %v69
    %v71 = vmul.f32 %v63, %v70
    %v72 = vmul.f32 %v71, %v55
    %v73 = vadd.f32 %v72, %v56
    %v74 = vld [vmem:[#allocation2] sm:$0xf]
    %v75 = vld [vmem:[#allocation2 + $0x10] sm:$0xf]
    %v76 = vld [vmem:[#allocation2 + $0x20] sm:$0xf]
    %v77 = vld [vmem:[#allocation4 + $0x2] ss:$0 sm:$0xff]
    %v78 = vld [vmem:[#allocation4 + $0x3] ss:$0 sm:$0xff]
    %v79 = vld [vmem:[#allocation4 + $0x4] ss:$0 sm:$0xff]
    %v80 = vpack.c.bf16 %v73, %v73
    %v84 = vunpack.c.l.b16 %v74
    %v85 = vunpack.c.l.b16 %v75
    %v86 = vunpack.c.l.b16 %v76
    %v87 = vpack.c.b16 %v85, %v84
    %v88 = vpack.c.b16 %v86, %v86
    %v91 = vsel %vm57, %v80, 0
    %vm93 = vcmask 1043456
    %v95 = vsel %vm93, %v88, 0
    %97 = vmatprep.subr.bf16.mxu0 0
    %98 = vmatpush1.bf16.msra.mxu0 %v87
    %99 = vmatprep.subr.bf16.mxu0 0
    %100 = vmatpush1.bf16.msra.mxu0 %v95
    %101 = vmatprep.subr.bf16.mxu0 0
    %102 = vmatpush1.bf16.msra.mxu0 0
    %103 = vmatprep.subr.bf16.mxu0 0
    %104 = vmatpush1.bf16.msra.mxu0 0
    %105 = vmatprep.subr.bf16.mxu0 0
    %106 = vmatpush1.bf16.msra.mxu0 0
    %107 = vmatprep.subr.bf16.mxu0 0
    %108 = vmatpush1.bf16.msra.mxu0 0
    %109 = vmatprep.subr.bf16.mxu0 0
    %110 = vmatpush1.bf16.msra.mxu0 0
    %111 = vmatprep.subr.bf16.mxu0 0
    %112 = vmatpush1.bf16.msra.mxu0 0
    %113 = vmatprep.subr.bf16.mxu0 0
    %114 = vmatpush1.bf16.msra.mxu0 0
    %115 = vmatprep.subr.bf16.mxu0 0
    %116 = vmatpush1.bf16.msra.mxu0 0
    %117 = vmatprep.subr.bf16.mxu0 0
    %118 = vmatpush1.bf16.msra.mxu0 0
    %119 = vmatprep.subr.bf16.mxu0 0
    %120 = vmatpush1.bf16.msra.mxu0 0
    %121 = vmatprep.subr.bf16.mxu0 0
    %122 = vmatpush1.bf16.msra.mxu0 0
    %123 = vmatprep.subr.bf16.mxu0 0
    %124 = vmatpush1.bf16.msra.mxu0 0
    %125 = vmatprep.subr.bf16.mxu0 0
    %126 = vmatpush1.bf16.msra.mxu0 0
    %127 = vmatprep.subr.bf16.mxu0 0
    %128 = vmatpush1.bf16.msra.mxu0 0
    %129 = vmatprep.mubr.bf16.mxu0 0
    %130 = vmatmul.mubr.bf16.gmra.mrb[0].mxu0 %v91
    %v131 = vpop.f32.mrb[0].mxu0
    %v132 = vadd.f32 %v77, %v131
    %v133 = vpop.f32.mrb[0].mxu0
    %v134 = vpop.f32.mrb[0].mxu0
    %v135 = vpop.f32.mrb[0].mxu0
    %136 = vdwg.mxu0
    %v137 = vmax.f32 %v132, 0.0
    %138 = vadd.xlane.f32.xlu0 %v137
    %v139 = vpop.xlane.xlu0 %138
    %v140 = vrcp.pop 128.0
    %v141 = vmul.f32 %v139, %v140
    %v142 = vsub.f32 %v137, %v141
    %v143 = vmul.f32 %v142, %v142
    %144 = vadd.xlane.f32.xlu0 %v143
    %v145 = vpop.xlane.xlu0 %144
    %v146 = vmul.f32 %v145, %v140
    %v147 = vadd.f32 %v146, 1e-05
    %v148 = vrsqrt.pop %v147
    %v149 = vmul.f32 %v142, %v148
    %v150 = vmul.f32 %v149, %v78
    %v151 = vadd.f32 %v150, %v79
    %v152 = vld [vmem:[#allocation2 + $0x40] sm:$0xf]
    %v153 = vld [vmem:[#allocation2 + $0x50] sm:$0xf]
    %v154 = vld [vmem:[#allocation2 + $0x60] sm:$0xf]
    %v155 = vld [vmem:[#allocation2 + $0x70] sm:$0xf]
    %v156 = vld [vmem:[#allocation2 + $0x80] sm:$0xf]
    %v157 = vld [vmem:[#allocation2 + $0x90] sm:$0xf]
    %v158 = vld [vmem:[#allocation2 + $0xa0] sm:$0xf]
    %v159 = vld [vmem:[#allocation2 + $0xb0] sm:$0xf]
    %v160 = vld [vmem:[#allocation2 + $0xc0] sm:$0xf]
    %v161 = vld [vmem:[#allocation2 + $0xd0] sm:$0xf]
    %v162 = vld [vmem:[#allocation2 + $0xe0] sm:$0xf]
    %v163 = vld [vmem:[#allocation2 + $0xf0] sm:$0xf]
    %v164 = vld [vmem:[#allocation2 + $0x100] sm:$0xf]
    %v165 = vld [vmem:[#allocation2 + $0x110] sm:$0xf]
    %v166 = vld [vmem:[#allocation2 + $0x120] sm:$0xf]
    %v167 = vld [vmem:[#allocation2 + $0x130] sm:$0xf]
    %v168 = vld [vmem:[#allocation4 + $0x5] ss:$0 sm:$0xff]
    %v169 = vld [vmem:[#allocation4 + $0x6] ss:$0 sm:$0xff]
    %v170 = vld [vmem:[#allocation4 + $0x7] ss:$0 sm:$0xff]
    %v171 = vpack.c.bf16 %v151, %v151
    %v188 = vunpack.c.l.b16 %v152
    %v189 = vunpack.c.l.b16 %v153
    %v190 = vunpack.c.l.b16 %v154
    %v191 = vunpack.c.l.b16 %v155
    %v192 = vunpack.c.l.b16 %v156
    %v193 = vunpack.c.l.b16 %v157
    %v194 = vunpack.c.l.b16 %v158
    %v195 = vunpack.c.l.b16 %v159
    %v196 = vunpack.c.l.b16 %v160
    %v197 = vunpack.c.l.b16 %v161
    %v198 = vunpack.c.l.b16 %v162
    %v199 = vunpack.c.l.b16 %v163
    %v200 = vunpack.c.l.b16 %v164
    %v201 = vunpack.c.l.b16 %v165
    %v202 = vunpack.c.l.b16 %v166
    %v203 = vunpack.c.l.b16 %v167
    %v204 = vpack.c.b16 %v189, %v188
    %v205 = vpack.c.b16 %v191, %v190
    %v206 = vpack.c.b16 %v193, %v192
    %v207 = vpack.c.b16 %v195, %v194
    %v208 = vpack.c.b16 %v197, %v196
    %v209 = vpack.c.b16 %v199, %v198
    %v210 = vpack.c.b16 %v201, %v200
    %v211 = vpack.c.b16 %v203, %v202
    %220 = vmatprep.subr.bf16.mxu0 0
    %221 = vmatpush1.bf16.msra.mxu0 %v204
    %222 = vmatprep.subr.bf16.mxu0 0
    %223 = vmatpush1.bf16.msra.mxu0 %v205
    %224 = vmatprep.subr.bf16.mxu0 0
    %225 = vmatpush1.bf16.msra.mxu0 %v206
    %226 = vmatprep.subr.bf16.mxu0 0
    %227 = vmatpush1.bf16.msra.mxu0 %v207
    %228 = vmatprep.subr.bf16.mxu0 0
    %229 = vmatpush1.bf16.msra.mxu0 %v208
    %230 = vmatprep.subr.bf16.mxu0 0
    %231 = vmatpush1.bf16.msra.mxu0 %v209
    %232 = vmatprep.subr.bf16.mxu0 0
    %233 = vmatpush1.bf16.msra.mxu0 %v210
    %234 = vmatprep.subr.bf16.mxu0 0
    %235 = vmatpush1.bf16.msra.mxu0 %v211
    %236 = vmatprep.subr.bf16.mxu0 0
    %237 = vmatpush1.bf16.msra.mxu0 0
    %238 = vmatprep.subr.bf16.mxu0 0
    %239 = vmatpush1.bf16.msra.mxu0 0
    %240 = vmatprep.subr.bf16.mxu0 0
    %241 = vmatpush1.bf16.msra.mxu0 0
    %242 = vmatprep.subr.bf16.mxu0 0
    %243 = vmatpush1.bf16.msra.mxu0 0
    %244 = vmatprep.subr.bf16.mxu0 0
    %245 = vmatpush1.bf16.msra.mxu0 0
    %246 = vmatprep.subr.bf16.mxu0 0
    %247 = vmatpush1.bf16.msra.mxu0 0
    %248 = vmatprep.subr.bf16.mxu0 0
    %249 = vmatpush1.bf16.msra.mxu0 0
    %250 = vmatprep.subr.bf16.mxu0 0
    %251 = vmatpush1.bf16.msra.mxu0 0
    %252 = vmatprep.mubr.bf16.mxu0 0
    %253 = vmatmul.mubr.bf16.gmra.mrb[0].mxu0 %v171
    %v254 = vpop.f32.mrb[0].mxu0
    %v255 = vadd.f32 %v168, %v254
    %v256 = vpop.f32.mrb[0].mxu0
    %v257 = vpop.f32.mrb[0].mxu0
    %v258 = vpop.f32.mrb[0].mxu0
    %259 = vdwg.mxu0
    %v260 = vmax.f32 %v255, 0.0
    %261 = vadd.xlane.f32.xlu0 %v260
    %v262 = vpop.xlane.xlu0 %261
    %v263 = vmul.f32 %v262, %v140
    %v264 = vsub.f32 %v260, %v263
    %v265 = vmul.f32 %v264, %v264
    %266 = vadd.xlane.f32.xlu0 %v265
    %v267 = vpop.xlane.xlu0 %266
    %v268 = vmul.f32 %v267, %v140
    %v269 = vadd.f32 %v268, 1e-05
    %v270 = vrsqrt.pop %v269
    %v271 = vmul.f32 %v264, %v270
    %v272 = vmul.f32 %v271, %v169
    %v273 = vadd.f32 %v272, %v170
    %v274 = vld [vmem:[%s1] sm:$0xff]
    %v275 = vld [vmem:[%s2] sm:$0xff]
    %277 = vset.pattern.permute.xlu0 0
    %278 = vperm.xlu0 %277, %v275
    %v279 = vpop.permute.xlu0 %278
    %v281 = vmul.f32 %v274, %v279
    %v282 = vld [vmem:[#allocation2 + $0x140] sm:$0xff]
    %v283 = vld [vmem:[#allocation2 + $0x148] sm:$0xff]
    %v284 = vld [vmem:[#allocation2 + $0x150] sm:$0xff]
    %v285 = vld [vmem:[#allocation2 + $0x158] sm:$0xff]
    %v286 = vld [vmem:[#allocation2 + $0x160] sm:$0xff]
    %v287 = vld [vmem:[#allocation2 + $0x168] sm:$0xff]
    %v288 = vld [vmem:[#allocation2 + $0x170] sm:$0xff]
    %v289 = vld [vmem:[#allocation2 + $0x178] sm:$0xff]
    %v290 = vld [vmem:[#allocation2 + $0x180] sm:$0xff]
    %v291 = vld [vmem:[#allocation2 + $0x188] sm:$0xff]
    %v292 = vld [vmem:[#allocation2 + $0x190] sm:$0xff]
    %v293 = vld [vmem:[#allocation2 + $0x198] sm:$0xff]
    %v294 = vld [vmem:[#allocation2 + $0x1a0] sm:$0xff]
    %v295 = vld [vmem:[#allocation2 + $0x1a8] sm:$0xff]
    %v296 = vld [vmem:[#allocation2 + $0x1b0] sm:$0xff]
    %v297 = vld [vmem:[#allocation2 + $0x1b8] sm:$0xff]
    %v298 = vld [vmem:[#allocation2 + $0x1c0] sm:$0xff]
    %v299 = vld [vmem:[#allocation2 + $0x1c8] sm:$0xff]
    %v300 = vld [vmem:[#allocation2 + $0x1d0] sm:$0xff]
    %v301 = vld [vmem:[#allocation2 + $0x1d8] sm:$0xff]
    %v302 = vld [vmem:[#allocation2 + $0x1e0] sm:$0xff]
    %v303 = vld [vmem:[#allocation2 + $0x1e8] sm:$0xff]
    %v304 = vld [vmem:[#allocation2 + $0x1f0] sm:$0xff]
    %v305 = vld [vmem:[#allocation2 + $0x1f8] sm:$0xff]
    %v306 = vld [vmem:[#allocation2 + $0x200] sm:$0xff]
    %v307 = vld [vmem:[#allocation2 + $0x208] sm:$0xff]
    %v308 = vld [vmem:[#allocation2 + $0x210] sm:$0xff]
    %v309 = vld [vmem:[#allocation2 + $0x218] sm:$0xff]
    %v310 = vld [vmem:[#allocation2 + $0x220] sm:$0xff]
    %v311 = vld [vmem:[#allocation2 + $0x228] sm:$0xff]
    %v312 = vld [vmem:[#allocation2 + $0x230] sm:$0xff]
    %v313 = vld [vmem:[#allocation2 + $0x238] sm:$0xff]
    %v314 = vld [vmem:[#allocation2 + $0x240] sm:$0xff]
    %v315 = vld [vmem:[#allocation2 + $0x248] sm:$0xff]
    %v316 = vld [vmem:[#allocation2 + $0x250] sm:$0xff]
    %v317 = vld [vmem:[#allocation2 + $0x258] sm:$0xff]
    %v318 = vld [vmem:[#allocation2 + $0x260] sm:$0xff]
    %v319 = vld [vmem:[#allocation2 + $0x268] sm:$0xff]
    %v320 = vld [vmem:[#allocation2 + $0x270] sm:$0xff]
    %v321 = vld [vmem:[#allocation2 + $0x278] sm:$0xff]
    %v322 = vld [vmem:[#allocation2 + $0x280] sm:$0xff]
    %v323 = vld [vmem:[#allocation2 + $0x288] sm:$0xff]
    %v324 = vld [vmem:[#allocation2 + $0x290] sm:$0xff]
    %v325 = vld [vmem:[#allocation2 + $0x298] sm:$0xff]
    %v326 = vld [vmem:[#allocation2 + $0x2a0] sm:$0xff]
    %v327 = vld [vmem:[#allocation2 + $0x2a8] sm:$0xff]
    %v328 = vld [vmem:[#allocation2 + $0x2b0] sm:$0xff]
    %v329 = vld [vmem:[#allocation2 + $0x2b8] sm:$0xff]
    %v330 = vld [vmem:[#allocation2 + $0x2c0] sm:$0xff]
    %v331 = vld [vmem:[#allocation2 + $0x2c8] sm:$0xff]
    %v332 = vld [vmem:[#allocation2 + $0x2d0] sm:$0xff]
    %v333 = vld [vmem:[#allocation2 + $0x2d8] sm:$0xff]
    %v334 = vld [vmem:[#allocation2 + $0x2e0] sm:$0xff]
    %v335 = vld [vmem:[#allocation2 + $0x2e8] sm:$0xff]
    %v336 = vld [vmem:[#allocation2 + $0x2f0] sm:$0xff]
    %v337 = vld [vmem:[#allocation2 + $0x2f8] sm:$0xff]
    %v338 = vld [vmem:[#allocation2 + $0x300] sm:$0xff]
    %v339 = vld [vmem:[#allocation2 + $0x308] sm:$0xff]
    %v340 = vld [vmem:[#allocation2 + $0x310] sm:$0xff]
    %v341 = vld [vmem:[#allocation2 + $0x318] sm:$0xff]
    %v342 = vld [vmem:[#allocation2 + $0x320] sm:$0xff]
    %v343 = vld [vmem:[#allocation2 + $0x328] sm:$0xff]
    %v344 = vld [vmem:[#allocation2 + $0x330] sm:$0xff]
    %v345 = vld [vmem:[#allocation2 + $0x338] sm:$0xff]
    %v346 = vpack.c.bf16 %v273, %v273
    %v347 = vpack.c.bf16 %v281, %v281
    %s348 = scalar_lea.vmem [#allocation4], 32
    %v349 = vld [vmem:[%s348] ss:$8 sm:$0xf]
    %v351 = vlaneseq
    %v352 = vshrl.u32 %v351, 7
    %v353 = vsub.s32 0, %v352
    %v354 = vrot.slane %v349, %v353
    %v355 = vlaneseq
    %v356 = vshrl.u32 %v355, 7
    %v357 = vsub.s32 1, %v356
    %v358 = vrot.slane %v349, %v357
    %v359 = vlaneseq
    %v360 = vshrl.u32 %v359, 7
    %v361 = vsub.s32 2, %v360
    %v362 = vrot.slane %v349, %v361
    %v363 = vlaneseq
    %v364 = vshrl.u32 %v363, 7
    %v365 = vsub.s32 3, %v364
    %v366 = vrot.slane %v349, %v365
    %v435 = vunpack.c.l.b16 %v282
    %v436 = vunpack.c.h.b16 %v282
    %v437 = vunpack.c.l.b16 %v283
    %v438 = vunpack.c.h.b16 %v283
    %v439 = vunpack.c.l.b16 %v284
    %v440 = vunpack.c.h.b16 %v284
    %v441 = vunpack.c.l.b16 %v285
    %v442 = vunpack.c.h.b16 %v285
    %v443 = vunpack.c.l.b16 %v286
    %v444 = vunpack.c.h.b16 %v286
    %v445 = vunpack.c.l.b16 %v287
    %v446 = vunpack.c.h.b16 %v287
    %v447 = vunpack.c.l.b16 %v288
    %v448 = vunpack.c.h.b16 %v288
    %v449 = vunpack.c.l.b16 %v289
    %v450 = vunpack.c.h.b16 %v289
    %v451 = vunpack.c.l.b16 %v290
    %v452 = vunpack.c.h.b16 %v290
    %v453 = vunpack.c.l.b16 %v291
    %v454 = vunpack.c.h.b16 %v291
    %v455 = vunpack.c.l.b16 %v292
    %v456 = vunpack.c.h.b16 %v292
    %v457 = vunpack.c.l.b16 %v293
    %v458 = vunpack.c.h.b16 %v293
    %v459 = vunpack.c.l.b16 %v294
    %v460 = vunpack.c.h.b16 %v294
    %v461 = vunpack.c.l.b16 %v295
    %v462 = vunpack.c.h.b16 %v295
    %v463 = vunpack.c.l.b16 %v296
    %v464 = vunpack.c.h.b16 %v296
    %v465 = vunpack.c.l.b16 %v297
    %v466 = vunpack.c.h.b16 %v297
    %v467 = vunpack.c.l.b16 %v298
    %v468 = vunpack.c.h.b16 %v298
    %v469 = vunpack.c.l.b16 %v299
    %v470 = vunpack.c.h.b16 %v299
    %v471 = vunpack.c.l.b16 %v300
    %v472 = vunpack.c.h.b16 %v300
    %v473 = vunpack.c.l.b16 %v301
    %v474 = vunpack.c.h.b16 %v301
    %v475 = vunpack.c.l.b16 %v302
    %v476 = vunpack.c.h.b16 %v302
    %v477 = vunpack.c.l.b16 %v303
    %v478 = vunpack.c.h.b16 %v303
    %v479 = vunpack.c.l.b16 %v304
    %v480 = vunpack.c.h.b16 %v304
    %v481 = vunpack.c.l.b16 %v305
    %v482 = vunpack.c.h.b16 %v305
    %v483 = vunpack.c.l.b16 %v306
    %v484 = vunpack.c.h.b16 %v306
    %v485 = vunpack.c.l.b16 %v307
    %v486 = vunpack.c.h.b16 %v307
    %v487 = vunpack.c.l.b16 %v308
    %v488 = vunpack.c.h.b16 %v308
    %v489 = vunpack.c.l.b16 %v309
    %v490 = vunpack.c.h.b16 %v309
    %v491 = vunpack.c.l.b16 %v310
    %v492 = vunpack.c.h.b16 %v310
    %v493 = vunpack.c.l.b16 %v311
    %v494 = vunpack.c.h.b16 %v311
    %v495 = vunpack.c.l.b16 %v312
    %v496 = vunpack.c.h.b16 %v312
    %v497 = vunpack.c.l.b16 %v313
    %v498 = vunpack.c.h.b16 %v313
    %v499 = vunpack.c.l.b16 %v314
    %v500 = vunpack.c.h.b16 %v314
    %v501 = vunpack.c.l.b16 %v315
    %v502 = vunpack.c.h.b16 %v315
    %v503 = vunpack.c.l.b16 %v316
    %v504 = vunpack.c.h.b16 %v316
    %v505 = vunpack.c.l.b16 %v317
    %v506 = vunpack.c.h.b16 %v317
    %v507 = vunpack.c.l.b16 %v318
    %v508 = vunpack.c.h.b16 %v318
    %v509 = vunpack.c.l.b16 %v319
    %v510 = vunpack.c.h.b16 %v319
    %v511 = vunpack.c.l.b16 %v320
    %v512 = vunpack.c.h.b16 %v320
    %v513 = vunpack.c.l.b16 %v321
    %v514 = vunpack.c.h.b16 %v321
    %v515 = vunpack.c.l.b16 %v322
    %v516 = vunpack.c.h.b16 %v322
    %v517 = vunpack.c.l.b16 %v323
    %v518 = vunpack.c.h.b16 %v323
    %v519 = vunpack.c.l.b16 %v324
    %v520 = vunpack.c.h.b16 %v324
    %v521 = vunpack.c.l.b16 %v325
    %v522 = vunpack.c.h.b16 %v325
    %v523 = vunpack.c.l.b16 %v326
    %v524 = vunpack.c.h.b16 %v326
    %v525 = vunpack.c.l.b16 %v327
    %v526 = vunpack.c.h.b16 %v327
    %v527 = vunpack.c.l.b16 %v328
    %v528 = vunpack.c.h.b16 %v328
    %v529 = vunpack.c.l.b16 %v329
    %v530 = vunpack.c.h.b16 %v329
    %v531 = vunpack.c.l.b16 %v330
    %v532 = vunpack.c.h.b16 %v330
    %v533 = vunpack.c.l.b16 %v331
    %v534 = vunpack.c.h.b16 %v331
    %v535 = vunpack.c.l.b16 %v332
    %v536 = vunpack.c.h.b16 %v332
    %v537 = vunpack.c.l.b16 %v333
    %v538 = vunpack.c.h.b16 %v333
    %v539 = vunpack.c.l.b16 %v334
    %v540 = vunpack.c.h.b16 %v334
    %v541 = vunpack.c.l.b16 %v335
    %v542 = vunpack.c.h.b16 %v335
    %v543 = vunpack.c.l.b16 %v336
    %v544 = vunpack.c.h.b16 %v336
    %v545 = vunpack.c.l.b16 %v337
    %v546 = vunpack.c.h.b16 %v337
    %v547 = vunpack.c.l.b16 %v338
    %v548 = vunpack.c.h.b16 %v338
    %v549 = vunpack.c.l.b16 %v339
    %v550 = vunpack.c.h.b16 %v339
    %v551 = vunpack.c.l.b16 %v340
    %v552 = vunpack.c.h.b16 %v340
    %v553 = vunpack.c.l.b16 %v341
    %v554 = vunpack.c.h.b16 %v341
    %v555 = vunpack.c.l.b16 %v342
    %v556 = vunpack.c.h.b16 %v342
    %v557 = vunpack.c.l.b16 %v343
    %v558 = vunpack.c.h.b16 %v343
    %v559 = vunpack.c.l.b16 %v344
    %v560 = vunpack.c.h.b16 %v344
    %v561 = vunpack.c.l.b16 %v345
    %v562 = vunpack.c.h.b16 %v345
    %v563 = vpack.c.b16 %v439, %v435
    %v564 = vpack.c.b16 %v440, %v436
    %v565 = vpack.c.b16 %v441, %v437
    %v566 = vpack.c.b16 %v442, %v438
    %v567 = vpack.c.b16 %v447, %v443
    %v568 = vpack.c.b16 %v448, %v444
    %v569 = vpack.c.b16 %v449, %v445
    %v570 = vpack.c.b16 %v450, %v446
    %v571 = vpack.c.b16 %v455, %v451
    %v572 = vpack.c.b16 %v456, %v452
    %v573 = vpack.c.b16 %v457, %v453
    %v574 = vpack.c.b16 %v458, %v454
    %v575 = vpack.c.b16 %v463, %v459
    %v576 = vpack.c.b16 %v464, %v460
    %v577 = vpack.c.b16 %v465, %v461
    %v578 = vpack.c.b16 %v466, %v462
    %v579 = vpack.c.b16 %v471, %v467
    %v580 = vpack.c.b16 %v472, %v468
    %v581 = vpack.c.b16 %v473, %v469
    %v582 = vpack.c.b16 %v474, %v470
    %v583 = vpack.c.b16 %v479, %v475
    %v584 = vpack.c.b16 %v480, %v476
    %v585 = vpack.c.b16 %v481, %v477
    %v586 = vpack.c.b16 %v482, %v478
    %v587 = vpack.c.b16 %v487, %v483
    %v588 = vpack.c.b16 %v488, %v484
    %v589 = vpack.c.b16 %v489, %v485
    %v590 = vpack.c.b16 %v490, %v486
    %v591 = vpack.c.b16 %v495, %v491
    %v592 = vpack.c.b16 %v496, %v492
    %v593 = vpack.c.b16 %v497, %v493
    %v594 = vpack.c.b16 %v498, %v494
    %v595 = vpack.c.b16 %v503, %v499
    %v596 = vpack.c.b16 %v504, %v500
    %v597 = vpack.c.b16 %v505, %v501
    %v598 = vpack.c.b16 %v506, %v502
    %v599 = vpack.c.b16 %v511, %v507
    %v600 = vpack.c.b16 %v512, %v508
    %v601 = vpack.c.b16 %v513, %v509
    %v602 = vpack.c.b16 %v514, %v510
    %v603 = vpack.c.b16 %v519, %v515
    %v604 = vpack.c.b16 %v520, %v516
    %v605 = vpack.c.b16 %v521, %v517
    %v606 = vpack.c.b16 %v522, %v518
    %v607 = vpack.c.b16 %v527, %v523
    %v608 = vpack.c.b16 %v528, %v524
    %v609 = vpack.c.b16 %v529, %v525
    %v610 = vpack.c.b16 %v530, %v526
    %v611 = vpack.c.b16 %v535, %v531
    %v612 = vpack.c.b16 %v536, %v532
    %v613 = vpack.c.b16 %v537, %v533
    %v614 = vpack.c.b16 %v538, %v534
    %v615 = vpack.c.b16 %v543, %v539
    %v616 = vpack.c.b16 %v544, %v540
    %v617 = vpack.c.b16 %v545, %v541
    %v618 = vpack.c.b16 %v546, %v542
    %v619 = vpack.c.b16 %v551, %v547
    %v620 = vpack.c.b16 %v552, %v548
    %v621 = vpack.c.b16 %v553, %v549
    %v622 = vpack.c.b16 %v554, %v550
    %v623 = vpack.c.b16 %v559, %v555
    %v624 = vpack.c.b16 %v560, %v556
    %v625 = vpack.c.b16 %v561, %v557
    %v626 = vpack.c.b16 %v562, %v558
    %691 = vmatprep.subr.bf16.mxu0 %v564
    %692 = vmatpush1.bf16.msra.mxu0 %v563
    %693 = vmatprep.subr.bf16.mxu0 %v568
    %694 = vmatpush1.bf16.msra.mxu0 %v567
    %695 = vmatprep.subr.bf16.mxu0 %v572
    %696 = vmatpush1.bf16.msra.mxu0 %v571
    %697 = vmatprep.subr.bf16.mxu0 %v576
    %698 = vmatpush1.bf16.msra.mxu0 %v575
    %699 = vmatprep.subr.bf16.mxu0 %v580
    %700 = vmatpush1.bf16.msra.mxu0 %v579
    %701 = vmatprep.subr.bf16.mxu0 %v584
    %702 = vmatpush1.bf16.msra.mxu0 %v583
    %703 = vmatprep.subr.bf16.mxu0 %v588
    %704 = vmatpush1.bf16.msra.mxu0 %v587
    %705 = vmatprep.subr.bf16.mxu0 %v592
    %706 = vmatpush1.bf16.msra.mxu0 %v591
    %707 = vmatprep.subr.bf16.mxu0 %v596
    %708 = vmatpush1.bf16.msra.mxu0 %v595
    %709 = vmatprep.subr.bf16.mxu0 %v600
    %710 = vmatpush1.bf16.msra.mxu0 %v599
    %711 = vmatprep.subr.bf16.mxu0 %v604
    %712 = vmatpush1.bf16.msra.mxu0 %v603
    %713 = vmatprep.subr.bf16.mxu0 %v608
    %714 = vmatpush1.bf16.msra.mxu0 %v607
    %715 = vmatprep.subr.bf16.mxu0 %v612
    %716 = vmatpush1.bf16.msra.mxu0 %v611
    %717 = vmatprep.subr.bf16.mxu0 %v616
    %718 = vmatpush1.bf16.msra.mxu0 %v615
    %719 = vmatprep.subr.bf16.mxu0 %v620
    %720 = vmatpush1.bf16.msra.mxu0 %v619
    %721 = vmatprep.subr.bf16.mxu0 %v624
    %722 = vmatpush1.bf16.msra.mxu0 %v623
    %723 = vmatprep.mubr.bf16.mxu0 %v347
    %724 = vmatmul.mubr.bf16.gmra.mrb[0].mxu0 %v346
    %v725 = vpop.f32.mrb[0].mxu0
    %v726 = vadd.f32 %v354, %v725
    %v727 = vpop.f32.mrb[0].mxu0
    %v728 = vadd.f32 %v358, %v727
    %v729 = vpop.f32.mrb[0].mxu0
    %v730 = vpop.f32.mrb[0].mxu0
    %731 = vdwg.mxu0
    %732 = vmatprep.subr.bf16.mxu0 %v566
    %733 = vmatpush1.bf16.msra.mxu0 %v565
    %734 = vmatprep.subr.bf16.mxu0 %v570
    %735 = vmatpush1.bf16.msra.mxu0 %v569
    %736 = vmatprep.subr.bf16.mxu0 %v574
    %737 = vmatpush1.bf16.msra.mxu0 %v573
    %738 = vmatprep.subr.bf16.mxu0 %v578
    %739 = vmatpush1.bf16.msra.mxu0 %v577
    %740 = vmatprep.subr.bf16.mxu0 %v582
    %741 = vmatpush1.bf16.msra.mxu0 %v581
    %742 = vmatprep.subr.bf16.mxu0 %v586
    %743 = vmatpush1.bf16.msra.mxu0 %v585
    %744 = vmatprep.subr.bf16.mxu0 %v590
    %745 = vmatpush1.bf16.msra.mxu0 %v589
    %746 = vmatprep.subr.bf16.mxu0 %v594
    %747 = vmatpush1.bf16.msra.mxu0 %v593
    %748 = vmatprep.subr.bf16.mxu0 %v598
    %749 = vmatpush1.bf16.msra.mxu0 %v597
    %750 = vmatprep.subr.bf16.mxu0 %v602
    %751 = vmatpush1.bf16.msra.mxu0 %v601
    %752 = vmatprep.subr.bf16.mxu0 %v606
    %753 = vmatpush1.bf16.msra.mxu0 %v605
    %754 = vmatprep.subr.bf16.mxu0 %v610
    %755 = vmatpush1.bf16.msra.mxu0 %v609
    %756 = vmatprep.subr.bf16.mxu0 %v614
    %757 = vmatpush1.bf16.msra.mxu0 %v613
    %758 = vmatprep.subr.bf16.mxu0 %v618
    %759 = vmatpush1.bf16.msra.mxu0 %v617
    %760 = vmatprep.subr.bf16.mxu0 %v622
    %761 = vmatpush1.bf16.msra.mxu0 %v621
    %762 = vmatprep.subr.bf16.mxu0 %v626
    %763 = vmatpush1.bf16.msra.mxu0 %v625
    %764 = vmatprep.mubr.bf16.mxu0 %v347
    %765 = vmatmul.mubr.bf16.gmra.mrb[0].mxu0 %v346
    %v766 = vpop.f32.mrb[0].mxu0
    %v767 = vadd.f32 %v362, %v766
    %v768 = vpop.f32.mrb[0].mxu0
    %v769 = vadd.f32 %v366, %v768
    %v770 = vpop.f32.mrb[0].mxu0
    %v771 = vpop.f32.mrb[0].mxu0
    %772 = vdwg.mxu0
    %v773 = vxor.u32 %v726, 2147483648
    %v774 = vmul.f32 %v773, 1.442695
    %v775 = vpow.pop %v774
    %v776 = vadd.f32 %v775, 1.0
    %v777 = vrcp.pop %v776
    %v778 = vmul.f32 1.0, %v777
    %v779 = vxor.u32 %v728, 2147483648
    %v780 = vmul.f32 %v779, 1.442695
    %v781 = vpow.pop %v780
    %v782 = vadd.f32 %v781, 1.0
    %v783 = vrcp.pop %v782
    %v784 = vmul.f32 1.0, %v783
    %v785 = vmul.f32 %v778, %v769
    %v786 = vadd.f32 %v767, %v785
    %v787 = vtanh.pop %v786
    %v788 = vsub.f32 1.0, %v784
    %v789 = vmul.f32 %v788, %v787
    %v790 = vmul.f32 %v784, %v281
    %v791 = vadd.f32 %v789, %v790
    %792 = vst [vmem:[%s7] sm:$0xff] %v791
    %v793 = vld [vmem:[#allocation4 + $0x21] ss:$0 sm:$0xff]
    %v794 = vld [vmem:[#allocation4 + $0x22] ss:$0 sm:$0xff]
    %795 = vadd.xlane.f32.xlu0 %v791
    %v796 = vpop.xlane.xlu0 %795
    %v797 = vmul.f32 %v796, %v140
    %v798 = vsub.f32 %v791, %v797
    %v799 = vmul.f32 %v798, %v798
    %800 = vadd.xlane.f32.xlu0 %v799
    %v801 = vpop.xlane.xlu0 %800
    %v802 = vmul.f32 %v801, %v140
    %v803 = vadd.f32 %v802, 1e-05
    %v804 = vrsqrt.pop %v803
    %v805 = vmul.f32 %v798, %v804
    %v806 = vmul.f32 %v805, %v793
    %v807 = vadd.f32 %v806, %v794
    %v808 = vld [vmem:[#allocation4 + $0x23] ss:$0 sm:$0xff]
    %v809 = vld [vmem:[#allocation4 + $0x24] ss:$0 sm:$0xff]
    %810 = vadd.xlane.f32.xlu0 %v807
    %v811 = vpop.xlane.xlu0 %810
    %v812 = vmul.f32 %v811, %v140
    %v813 = vsub.f32 %v807, %v812
    %v814 = vmul.f32 %v813, %v813
    %815 = vadd.xlane.f32.xlu0 %v814
    %v816 = vpop.xlane.xlu0 %815
    %v817 = vmul.f32 %v816, %v140
    %v818 = vadd.f32 %v817, 1e-05
    %v819 = vrsqrt.pop %v818
    %v820 = vmul.f32 %v813, %v819
    %v821 = vmul.f32 %v820, %v808
    %v822 = vadd.f32 %v821, %v809
    %v823 = vld [vmem:[#allocation2 + $0x340] sm:$0xf]
    %v824 = vld [vmem:[#allocation2 + $0x350] sm:$0xf]
    %v825 = vld [vmem:[#allocation2 + $0x360] sm:$0xf]
    %v826 = vld [vmem:[#allocation2 + $0x370] sm:$0xf]
    %v827 = vld [vmem:[#allocation2 + $0x380] sm:$0xf]
    %v828 = vld [vmem:[#allocation2 + $0x390] sm:$0xf]
    %v829 = vld [vmem:[#allocation2 + $0x3a0] sm:$0xf]
    %v830 = vld [vmem:[#allocation2 + $0x3b0] sm:$0xf]
    %v831 = vld [vmem:[#allocation2 + $0x3c0] sm:$0xf]
    %v832 = vld [vmem:[#allocation2 + $0x3d0] sm:$0xf]
    %v833 = vld [vmem:[#allocation2 + $0x3e0] sm:$0xf]
    %v834 = vld [vmem:[#allocation2 + $0x3f0] sm:$0xf]
    %v835 = vld [vmem:[#allocation2 + $0x400] sm:$0xf]
    %v836 = vld [vmem:[#allocation2 + $0x410] sm:$0xf]
    %v837 = vld [vmem:[#allocation2 + $0x420] sm:$0xf]
    %v838 = vld [vmem:[#allocation2 + $0x430] sm:$0xf]
    %v839 = vld [vmem:[#allocation4 + $0x25] ss:$0 sm:$0xff]
    %v840 = vld [vmem:[#allocation4 + $0x26] ss:$0 sm:$0xff]
    %v841 = vld [vmem:[#allocation4 + $0x27] ss:$0 sm:$0xff]
    %v842 = vpack.c.bf16 %v822, %v822
    %v859 = vunpack.c.l.b16 %v823
    %v860 = vunpack.c.l.b16 %v824
    %v861 = vunpack.c.l.b16 %v825
    %v862 = vunpack.c.l.b16 %v826
    %v863 = vunpack.c.l.b16 %v827
    %v864 = vunpack.c.l.b16 %v828
    %v865 = vunpack.c.l.b16 %v829
    %v866 = vunpack.c.l.b16 %v830
    %v867 = vunpack.c.l.b16 %v831
    %v868 = vunpack.c.l.b16 %v832
    %v869 = vunpack.c.l.b16 %v833
    %v870 = vunpack.c.l.b16 %v834
    %v871 = vunpack.c.l.b16 %v835
    %v872 = vunpack.c.l.b16 %v836
    %v873 = vunpack.c.l.b16 %v837
    %v874 = vunpack.c.l.b16 %v838
    %v875 = vpack.c.b16 %v860, %v859
    %v876 = vpack.c.b16 %v862, %v861
    %v877 = vpack.c.b16 %v864, %v863
    %v878 = vpack.c.b16 %v866, %v865
    %v879 = vpack.c.b16 %v868, %v867
    %v880 = vpack.c.b16 %v870, %v869
    %v881 = vpack.c.b16 %v872, %v871
    %v882 = vpack.c.b16 %v874, %v873
    %891 = vmatprep.subr.bf16.mxu0 0
    %892 = vmatpush1.bf16.msra.mxu0 %v875
    %893 = vmatprep.subr.bf16.mxu0 0
    %894 = vmatpush1.bf16.msra.mxu0 %v876
    %895 = vmatprep.subr.bf16.mxu0 0
    %896 = vmatpush1.bf16.msra.mxu0 %v877
    %897 = vmatprep.subr.bf16.mxu0 0
    %898 = vmatpush1.bf16.msra.mxu0 %v878
    %899 = vmatprep.subr.bf16.mxu0 0
    %900 = vmatpush1.bf16.msra.mxu0 %v879
    %901 = vmatprep.subr.bf16.mxu0 0
    %902 = vmatpush1.bf16.msra.mxu0 %v880
    %903 = vmatprep.subr.bf16.mxu0 0
    %904 = vmatpush1.bf16.msra.mxu0 %v881
    %905 = vmatprep.subr.bf16.mxu0 0
    %906 = vmatpush1.bf16.msra.mxu0 %v882
    %907 = vmatprep.subr.bf16.mxu0 0
    %908 = vmatpush1.bf16.msra.mxu0 0
    %909 = vmatprep.subr.bf16.mxu0 0
    %910 = vmatpush1.bf16.msra.mxu0 0
    %911 = vmatprep.subr.bf16.mxu0 0
    %912 = vmatpush1.bf16.msra.mxu0 0
    %913 = vmatprep.subr.bf16.mxu0 0
    %914 = vmatpush1.bf16.msra.mxu0 0
    %915 = vmatprep.subr.bf16.mxu0 0
    %916 = vmatpush1.bf16.msra.mxu0 0
    %917 = vmatprep.subr.bf16.mxu0 0
    %918 = vmatpush1.bf16.msra.mxu0 0
    %919 = vmatprep.subr.bf16.mxu0 0
    %920 = vmatpush1.bf16.msra.mxu0 0
    %921 = vmatprep.subr.bf16.mxu0 0
    %922 = vmatpush1.bf16.msra.mxu0 0
    %923 = vmatprep.mubr.bf16.mxu0 0
    %924 = vmatmul.mubr.bf16.gmra.mrb[0].mxu0 %v842
    %v925 = vpop.f32.mrb[0].mxu0
    %v926 = vadd.f32 %v839, %v925
    %v927 = vpop.f32.mrb[0].mxu0
    %v928 = vpop.f32.mrb[0].mxu0
    %v929 = vpop.f32.mrb[0].mxu0
    %930 = vdwg.mxu0
    %v931 = vmax.f32 %v926, 0.0
    %932 = vadd.xlane.f32.xlu0 %v931
    %v933 = vpop.xlane.xlu0 %932
    %v934 = vmul.f32 %v933, %v140
    %v935 = vsub.f32 %v931, %v934
    %v936 = vmul.f32 %v935, %v935
    %937 = vadd.xlane.f32.xlu0 %v936
    %v938 = vpop.xlane.xlu0 %937
    %v939 = vmul.f32 %v938, %v140
    %v940 = vadd.f32 %v939, 1e-05
    %v941 = vrsqrt.pop %v940
    %v942 = vmul.f32 %v935, %v941
    %v943 = vmul.f32 %v942, %v840
    %v944 = vadd.f32 %v943, %v841
    %v945 = vld [vmem:[#allocation2 + $0x440] sm:$0xf]
    %v946 = vld [vmem:[#allocation2 + $0x450] sm:$0xf]
    %v947 = vld [vmem:[#allocation2 + $0x460] sm:$0xf]
    %v948 = vld [vmem:[#allocation2 + $0x470] sm:$0xf]
    %v949 = vld [vmem:[#allocation2 + $0x480] sm:$0xf]
    %v950 = vld [vmem:[#allocation2 + $0x490] sm:$0xf]
    %v951 = vld [vmem:[#allocation2 + $0x4a0] sm:$0xf]
    %v952 = vld [vmem:[#allocation2 + $0x4b0] sm:$0xf]
    %v953 = vld [vmem:[#allocation2 + $0x4c0] sm:$0xf]
    %v954 = vld [vmem:[#allocation2 + $0x4d0] sm:$0xf]
    %v955 = vld [vmem:[#allocation2 + $0x4e0] sm:$0xf]
    %v956 = vld [vmem:[#allocation2 + $0x4f0] sm:$0xf]
    %v957 = vld [vmem:[#allocation2 + $0x500] sm:$0xf]
    %v958 = vld [vmem:[#allocation2 + $0x510] sm:$0xf]
    %v959 = vld [vmem:[#allocation2 + $0x520] sm:$0xf]
    %v960 = vld [vmem:[#allocation2 + $0x530] sm:$0xf]
    %v961 = vld [vmem:[#allocation4 + $0x40] ss:$0 sm:$0xff]
    %v962 = vld [vmem:[#allocation4 + $0x41] ss:$0 sm:$0xff]
    %v963 = vld [vmem:[#allocation4 + $0x42] ss:$0 sm:$0xff]
    %v964 = vpack.c.bf16 %v944, %v944
    %v981 = vunpack.c.l.b16 %v945
    %v982 = vunpack.c.l.b16 %v946
    %v983 = vunpack.c.l.b16 %v947
    %v984 = vunpack.c.l.b16 %v948
    %v985 = vunpack.c.l.b16 %v949
    %v986 = vunpack.c.l.b16 %v950
    %v987 = vunpack.c.l.b16 %v951
    %v988 = vunpack.c.l.b16 %v952
    %v989 = vunpack.c.l.b16 %v953
    %v990 = vunpack.c.l.b16 %v954
    %v991 = vunpack.c.l.b16 %v955
    %v992 = vunpack.c.l.b16 %v956
    %v993 = vunpack.c.l.b16 %v957
    %v994 = vunpack.c.l.b16 %v958
    %v995 = vunpack.c.l.b16 %v959
    %v996 = vunpack.c.l.b16 %v960
    %v997 = vpack.c.b16 %v982, %v981
    %v998 = vpack.c.b16 %v984, %v983
    %v999 = vpack.c.b16 %v986, %v985
    %v1000 = vpack.c.b16 %v988, %v987
    %v1001 = vpack.c.b16 %v990, %v989
    %v1002 = vpack.c.b16 %v992, %v991
    %v1003 = vpack.c.b16 %v994, %v993
    %v1004 = vpack.c.b16 %v996, %v995
    %1013 = vmatprep.subr.bf16.mxu0 0
    %1014 = vmatpush1.bf16.msra.mxu0 %v997
    %1015 = vmatprep.subr.bf16.mxu0 0
    %1016 = vmatpush1.bf16.msra.mxu0 %v998
    %1017 = vmatprep.subr.bf16.mxu0 0
    %1018 = vmatpush1.bf16.msra.mxu0 %v999
    %1019 = vmatprep.subr.bf16.mxu0 0
    %1020 = vmatpush1.bf16.msra.mxu0 %v1000
    %1021 = vmatprep.subr.bf16.mxu0 0
    %1022 = vmatpush1.bf16.msra.mxu0 %v1001
    %1023 = vmatprep.subr.bf16.mxu0 0
    %1024 = vmatpush1.bf16.msra.mxu0 %v1002
    %1025 = vmatprep.subr.bf16.mxu0 0
    %1026 = vmatpush1.bf16.msra.mxu0 %v1003
    %1027 = vmatprep.subr.bf16.mxu0 0
    %1028 = vmatpush1.bf16.msra.mxu0 %v1004
    %1029 = vmatprep.subr.bf16.mxu0 0
    %1030 = vmatpush1.bf16.msra.mxu0 0
    %1031 = vmatprep.subr.bf16.mxu0 0
    %1032 = vmatpush1.bf16.msra.mxu0 0
    %1033 = vmatprep.subr.bf16.mxu0 0
    %1034 = vmatpush1.bf16.msra.mxu0 0
    %1035 = vmatprep.subr.bf16.mxu0 0
    %1036 = vmatpush1.bf16.msra.mxu0 0
    %1037 = vmatprep.subr.bf16.mxu0 0
    %1038 = vmatpush1.bf16.msra.mxu0 0
    %1039 = vmatprep.subr.bf16.mxu0 0
    %1040 = vmatpush1.bf16.msra.mxu0 0
    %1041 = vmatprep.subr.bf16.mxu0 0
    %1042 = vmatpush1.bf16.msra.mxu0 0
    %1043 = vmatprep.subr.bf16.mxu0 0
    %1044 = vmatpush1.bf16.msra.mxu0 0
    %1045 = vmatprep.mubr.bf16.mxu0 0
    %1046 = vmatmul.mubr.bf16.gmra.mrb[0].mxu0 %v964
    %v1047 = vpop.f32.mrb[0].mxu0
    %v1048 = vadd.f32 %v961, %v1047
    %v1049 = vpop.f32.mrb[0].mxu0
    %v1050 = vpop.f32.mrb[0].mxu0
    %v1051 = vpop.f32.mrb[0].mxu0
    %1052 = vdwg.mxu0
    %v1053 = vmax.f32 %v1048, 0.0
    %1054 = vadd.xlane.f32.xlu0 %v1053
    %v1055 = vpop.xlane.xlu0 %1054
    %v1056 = vmul.f32 %v1055, %v140
    %v1057 = vsub.f32 %v1053, %v1056
    %v1058 = vmul.f32 %v1057, %v1057
    %1059 = vadd.xlane.f32.xlu0 %v1058
    %v1060 = vpop.xlane.xlu0 %1059
    %v1061 = vmul.f32 %v1060, %v140
    %v1062 = vadd.f32 %v1061, 1e-05
    %v1063 = vrsqrt.pop %v1062
    %v1064 = vmul.f32 %v1057, %v1063
    %v1065 = vmul.f32 %v1064, %v962
    %v1066 = vadd.f32 %v1065, %v963
    %v1067 = vld [vmem:[#allocation2 + $0x540] sm:$0xf]
    %v1068 = vld [vmem:[#allocation2 + $0x550] sm:$0xf]
    %v1069 = vld [vmem:[#allocation2 + $0x560] sm:$0xf]
    %v1070 = vld [vmem:[#allocation2 + $0x570] sm:$0xf]
    %v1071 = vld [vmem:[#allocation2 + $0x580] sm:$0xf]
    %v1072 = vld [vmem:[#allocation2 + $0x590] sm:$0xf]
    %v1073 = vld [vmem:[#allocation2 + $0x5a0] sm:$0xf]
    %v1074 = vld [vmem:[#allocation2 + $0x5b0] sm:$0xf]
    %v1075 = vld [vmem:[#allocation2 + $0x5c0] sm:$0xf]
    %v1076 = vld [vmem:[#allocation2 + $0x5d0] sm:$0xf]
    %v1077 = vld [vmem:[#allocation2 + $0x5e0] sm:$0xf]
    %v1078 = vld [vmem:[#allocation2 + $0x5f0] sm:$0xf]
    %v1079 = vld [vmem:[#allocation2 + $0x600] sm:$0xf]
    %v1080 = vld [vmem:[#allocation2 + $0x610] sm:$0xf]
    %v1081 = vld [vmem:[#allocation2 + $0x620] sm:$0xf]
    %v1082 = vld [vmem:[#allocation2 + $0x630] sm:$0xf]
    %v1083 = vpack.c.bf16 %v1066, %v1066
    %v1084 = vld [vmem:[#allocation4 + $0x43] ss:$0 sm:$0xff]
    %v1101 = vunpack.c.l.b16 %v1067
    %v1102 = vunpack.c.l.b16 %v1068
    %v1103 = vunpack.c.l.b16 %v1069
    %v1104 = vunpack.c.l.b16 %v1070
    %v1105 = vunpack.c.l.b16 %v1071
    %v1106 = vunpack.c.l.b16 %v1072
    %v1107 = vunpack.c.l.b16 %v1073
    %v1108 = vunpack.c.l.b16 %v1074
    %v1109 = vunpack.c.l.b16 %v1075
    %v1110 = vunpack.c.l.b16 %v1076
    %v1111 = vunpack.c.l.b16 %v1077
    %v1112 = vunpack.c.l.b16 %v1078
    %v1113 = vunpack.c.l.b16 %v1079
    %v1114 = vunpack.c.l.b16 %v1080
    %v1115 = vunpack.c.l.b16 %v1081
    %v1116 = vunpack.c.l.b16 %v1082
    %v1117 = vpack.c.b16 %v1102, %v1101
    %v1118 = vpack.c.b16 %v1104, %v1103
    %v1119 = vpack.c.b16 %v1106, %v1105
    %v1120 = vpack.c.b16 %v1108, %v1107
    %v1121 = vpack.c.b16 %v1110, %v1109
    %v1122 = vpack.c.b16 %v1112, %v1111
    %v1123 = vpack.c.b16 %v1114, %v1113
    %v1124 = vpack.c.b16 %v1116, %v1115
    %1133 = vmatprep.subr.bf16.mxu0 0
    %1134 = vmatpush1.bf16.msra.mxu0 %v1117
    %1135 = vmatprep.subr.bf16.mxu0 0
    %1136 = vmatpush1.bf16.msra.mxu0 %v1118
    %1137 = vmatprep.subr.bf16.mxu0 0
    %1138 = vmatpush1.bf16.msra.mxu0 %v1119
    %1139 = vmatprep.subr.bf16.mxu0 0
    %1140 = vmatpush1.bf16.msra.mxu0 %v1120
    %1141 = vmatprep.subr.bf16.mxu0 0
    %1142 = vmatpush1.bf16.msra.mxu0 %v1121
    %1143 = vmatprep.subr.bf16.mxu0 0
    %1144 = vmatpush1.bf16.msra.mxu0 %v1122
    %1145 = vmatprep.subr.bf16.mxu0 0
    %1146 = vmatpush1.bf16.msra.mxu0 %v1123
    %1147 = vmatprep.subr.bf16.mxu0 0
    %1148 = vmatpush1.bf16.msra.mxu0 %v1124
    %1149 = vmatprep.subr.bf16.mxu0 0
    %1150 = vmatpush1.bf16.msra.mxu0 0
    %1151 = vmatprep.subr.bf16.mxu0 0
    %1152 = vmatpush1.bf16.msra.mxu0 0
    %1153 = vmatprep.subr.bf16.mxu0 0
    %1154 = vmatpush1.bf16.msra.mxu0 0
    %1155 = vmatprep.subr.bf16.mxu0 0
    %1156 = vmatpush1.bf16.msra.mxu0 0
    %1157 = vmatprep.subr.bf16.mxu0 0
    %1158 = vmatpush1.bf16.msra.mxu0 0
    %1159 = vmatprep.subr.bf16.mxu0 0
    %1160 = vmatpush1.bf16.msra.mxu0 0
    %1161 = vmatprep.subr.bf16.mxu0 0
    %1162 = vmatpush1.bf16.msra.mxu0 0
    %1163 = vmatprep.subr.bf16.mxu0 0
    %1164 = vmatpush1.bf16.msra.mxu0 0
    %1165 = vmatprep.mubr.bf16.mxu0 0
    %1166 = vmatmul.mubr.bf16.gmra.mrb[0].mxu0 %v1083
    %v1167 = vpop.f32.mrb[0].mxu0
    %v1168 = vadd.f32 %v1084, %v1167
    %v1169 = vpop.f32.mrb[0].mxu0
    %v1170 = vpop.f32.mrb[0].mxu0
    %v1171 = vpop.f32.mrb[0].mxu0
    %1172 = vdwg.mxu0
    %v1173 = vld [vmem:[%s3] sm:$0xff]
    %vm1174 = vcmp.gt.f32.partialorder %v1173, 0.5
    %v1175 = vsel %vm1174, %v1168, -1e+10
    %1176 = vmax.xlane.f32.xlu0 %v1175
    %v1177 = vpop.xlane.xlu0 %1176
    %v1178 = vsub.f32 %v1175, %v1177
    %v1179 = vmul.f32 %v1178, 1.442695
    %v1180 = vpow.pop %v1179
    %1181 = vadd.xlane.f32.xlu0 %v1180
    %v1182 = vpop.xlane.xlu0 %1181
    %v1183 = vlog2.pop %v1182
    %v1184 = vmul.f32 %v1183, 0.6931472
    %v1185 = vadd.f32 %v1177, %v1184
    %v1186 = vlaneseq
    %v1187 = vand.u32 %v1186, 127
    %vm1188 = vcmp.ge.f32.partialorder %v1175, %v1177
    %v1189 = vsel %vm1188, %v1187, 128
    %v1190 = vand.u32 %v1189, 65535
    %v1191 = vshra.s32 %v1189, 16
    %v1192 = vcvt.s32.f32 %v1190
    %v1193 = vcvt.s32.f32 %v1191
    %1194 = vmin.xlane.f32.xlu0 %v1193
    %v1195 = vpop.xlane.xlu0 %1194
    %vm1196 = vcmp.eq.f32.partialorder %v1193, %v1195
    %v1197 = vsel %vm1196, %v1192, inf
    %1198 = vmin.xlane.f32.xlu0 %v1197
    %v1199 = vpop.xlane.xlu0 %1198
    %v1200 = vcvt.f32.s32 %v1199
    %v1201 = vcvt.f32.s32 %v1195
    %v1202 = vshll.u32 %v1201, 16
    %v1203 = vadd.s32 %v1202, %v1200
    %v1204 = vsub.f32 %v1177, %v1185
    %vm1205 = vcmp.eq.s32.totalorder %v1187, 0
    %v1206 = vcvt.s32.f32 %v1203
    %vm1207 = vcmp.eq.s32.totalorder %v1187, 1
    %v1208 = vsel %vm1207, %v1204, 0.0
    %v1209 = vsel %vm1205, %v1206, %v1208
    %1210 = vst [vmem:[%s6] sm:$0xff] %v1209
    // Predicated region
    $region34: #{forward.1} parent=1 // pred_check
      _
    $region35: #{forward.1} parent=1 // pred_check_branch
      %1212 = sbr.rel (0) target = $region37
    $region36: #{forward.1} parent=1 // pred_region
      _
    $region37: #{forward.1} parent=1 // pred_fallthru
      _
    // Predicated region
    $region38: #{forward.1} parent=1 // pred_check
      _
    $region39: #{forward.1} parent=1 // pred_check_branch
      %1214 = sbr.rel (0) target = $region41
    $region40: #{forward.1} parent=1 // pred_region
      _
    $region41: #{forward.1} parent=1 // pred_fallthru
      _
    // Predicated region
    $region42: #{forward.1} parent=1 // pred_check
      _
    $region43: #{forward.1} parent=1 // pred_check_branch
      %1216 = sbr.rel (0) target = $region45
    $region44: #{forward.1} parent=1 // pred_region
      _
    $region45: #{forward.1} parent=1 // pred_fallthru
      _
    // Predicated region
    $region46: #{forward.1} parent=1 // pred_check
      _
    $region47: #{forward.1} parent=1 // pred_check_branch
      %1218 = sbr.rel (0) target = $region49
    $region48: #{forward.1} parent=1 // pred_region
      _
    $region49: #{forward.1} parent=1 // pred_fallthru
      _
    %1219 = vsyncpa [#allocation3], 1
    %1220 = vsyncpa [#allocation5], 1

</llo_original>
